<compile_context>
chip_gen: v5e
topology: v5e:2x2
jax: 0.10.0
libtpu: 0.0.40
codegen_flags: <defaults>
</compile_context>

<pallas_src>
import math

import jax
import jax.numpy as jnp
from jax.experimental import pallas as pl
from jax.experimental.pallas import tpu as pltpu


# ----------------------------- Pallas kernel --------------------------------
def _make_mha_kernel(batch_tile: int, seq_len: int, embed_dim: int,
                     num_heads: int, head_dim: int, layer_norm_eps: float,
                     mxu_dtype):
    BB, S, E, H, D = batch_tile, seq_len, embed_dim, num_heads, head_dim
    R = BB * S                      # rows in the activation slab for this step
    scale = 1.0 / math.sqrt(D)

    def kernel(x_ref, t_ref, m_ref,
               wq_ref, bq_ref, wk_ref, bk_ref, wv_ref, bv_ref,
               wo_ref, bo_ref, g_ref, beta_ref,
               out_ref):
        xf = x_ref[...]                       # (R, E) f32, query rows / residual
        tf = t_ref[...]                       # (R, E) f32, key/value rows
        x_m = xf.astype(mxu_dtype)
        t_m = tf.astype(mxu_dtype)

        # --- fused-head projections: one (R,E)x(E,E) MXU matmul each, f32 acc ---
        # 1/sqrt(D) folded into Q once (cheaper than scaling every (S,S) score tile)
        q = (jnp.dot(x_m, wq_ref[...], preferred_element_type=jnp.float32)
             + bq_ref[...]) * scale
        k = jnp.dot(t_m, wk_ref[...], preferred_element_type=jnp.float32) + bk_ref[...]
        v = jnp.dot(t_m, wv_ref[...], preferred_element_type=jnp.float32) + bv_ref[...]

        # sublane-major reshapes only (no lane splitting): (R,E) -> (BB,S,E)
        q3 = q.reshape(BB, S, E).astype(mxu_dtype)
        k3 = k.reshape(BB, S, E).astype(mxu_dtype)
        v3 = v.reshape(BB, S, E).astype(mxu_dtype)

        # additive key-padding bias, kept at (BB,1,S); broadcasts inside the VPU
        # add against the (BB,S,S) scores.  -1e5 matches the module's _extend_mask.
        neg_bias = (1.0 - m_ref[...]) * -100000.0          # (BB, 1, S) f32

        wo = wo_ref[...]                      # (E, E) resident weight, loaded once

        # --- attention; per-head context folded straight into the output dense ---
        dense = None
        for h in range(H):
            lo = h * D
            qh = q3[:, :, lo:lo + D]          # (BB, S, D)
            kh = k3[:, :, lo:lo + D]
            vh = v3[:, :, lo:lo + D]
            # batched over the batch tile, contraction on D (no explicit transpose)
            s = jnp.einsum("bqd,bkd->bqk", qh, kh,
                           preferred_element_type=jnp.float32)   # (BB,S,S) f32
            s = s + neg_bias
            s = s - jnp.max(s, axis=-1, keepdims=True)
            p = jnp.exp(s)
            p = p * pl.reciprocal(jnp.sum(p, axis=-1, keepdims=True), approx=True)
            ctx_h = jnp.einsum("bqk,bkd->bqd", p.astype(mxu_dtype), vh,
                               preferred_element_type=jnp.float32)  # (BB,S,D) f32
            # merge-heads + dense fused: concat_h(ctx_h) @ Wo == sum_h ctx_h @ Wo_h
            contrib = jnp.dot(ctx_h.reshape(R, D).astype(mxu_dtype),
                              wo[lo:lo + D, :],
                              preferred_element_type=jnp.float32)   # (R, E)
            dense = contrib if dense is None else dense + contrib

        # --- output bias + residual + LayerNorm, all in f32 ---
        dense = dense + bo_ref[...]
        r = dense + xf
        mu = jnp.mean(r, axis=-1, keepdims=True)
        var = jnp.mean((r - mu) * (r - mu), axis=-1, keepdims=True)
        normed = (r - mu) * jax.lax.rsqrt(var + layer_norm_eps)
        out_ref[...] = normed * g_ref[...] + beta_ref[...]

    return kernel


# ------------------------------ wrapper --------------------------------------
def _vmem_capacity_bytes() -> int:
    """Per-core VMEM capacity; conservative 64 MiB (v7x) fallback."""
    cap = 64 * 1024 * 1024
    try:
        info = pltpu.get_tpu_info()
        cap = int(getattr(info, "vmem_capacity_bytes", cap))
    except Exception:
        pass
    return cap


def _pick_batch_tile(batch: int, seq: int, embed: int, num_heads: int,
                     vmem_budget_bytes: int) -> int:
    """Largest divisor of `batch` whose row slab fits ~half the VMEM budget,
    capped at ~1024 rows, leaving >=2 grid steps for v7x's two TensorCores."""
    # rough live f32 bytes per slab row: x/t/out double-buffered blocks plus
    # q/k/v/dense/residual/normed temporaries (~16 copies of E) + score rows.
    per_row = 4 * embed * 16 + 4 * num_heads * seq * 3
    max_rows = min(1024, max(seq, vmem_budget_bytes // (2 * max(per_row, 1))))
    cap_bb = max(1, max_rows // seq)
    if batch >= 2:
        cap_bb = min(cap_bb, max(1, batch // 2))   # keep grid length >= 2
    bb = 1
    for d in range(1, batch + 1):
        if batch % d == 0 and d <= cap_bb:
            bb = d
    # (bb*seq, E) block must have a sublane dim divisible by 8 unless full-array.
    if (bb * seq) % 8 != 0 and bb != batch:
        bb = batch
    return bb


def multihead_attention(x, params, *, num_heads, layer_norm_eps,
                        tgt_features=None, tgt_mask=None, batch_tile=None,
                        use_bf16_mxu=True):
    """x: (B, S, E) float32. tgt_mask: (B, S) float32 of {0,1} or None."""
    if tgt_features is None:
        tgt_features = x
    B, S, E = x.shape
    assert E % num_heads == 0
    head_dim = E // num_heads
    if tgt_mask is None:
        tgt_mask = jnp.ones((B, S), dtype=jnp.float32)
    mask3 = tgt_mask.reshape(B, 1, S).astype(jnp.float32)

    vmem_cap = _vmem_capacity_bytes()
    if batch_tile is None:
        batch_tile = _pick_batch_tile(B, S, E, num_heads, vmem_cap)
    assert B % batch_tile == 0
    grid = (B // batch_tile,)
    R_tile = batch_tile * S

    mxu_dtype = jnp.bfloat16 if use_bf16_mxu else jnp.float32

    # nn.Linear weights [out, in] -> [in, out]; MXU operands cast once here.
    # Biases / LayerNorm affine stay f32 (added in f32 inside the kernel).
    wq = params["wq"].T.astype(mxu_dtype)
    wk = params["wk"].T.astype(mxu_dtype)
    wv = params["wv"].T.astype(mxu_dtype)
    wo = params["wo"].T.astype(mxu_dtype)
    bq = params["bq"].reshape(1, E).astype(jnp.float32)
    bk = params["bk"].reshape(1, E).astype(jnp.float32)
    bv = params["bv"].reshape(1, E).astype(jnp.float32)
    bo = params["bo"].reshape(1, E).astype(jnp.float32)
    gamma = params["gamma"].reshape(1, E).astype(jnp.float32)
    beta = params["beta"].reshape(1, E).astype(jnp.float32)

    # 2-D row slabs: the kernel block is (batch_tile*S, E) with no in-kernel flatten.
    x2 = x.reshape(B * S, E).astype(jnp.float32)
    t2 = tgt_features.reshape(B * S, E).astype(jnp.float32)

    kernel = _make_mha_kernel(batch_tile, S, E, num_heads, head_dim,
                              layer_norm_eps, mxu_dtype)

    act_spec = pl.BlockSpec((R_tile, E), lambda g: (g, 0))
    mask_spec = pl.BlockSpec((batch_tile, 1, S), lambda g: (g, 0, 0))
    mat_spec = pl.BlockSpec((E, E), lambda g: (0, 0))     # constant -> not re-DMA'd
    vec_spec = pl.BlockSpec((1, E), lambda g: (0, 0))
    out_spec = pl.BlockSpec((R_tile, E), lambda g: (g, 0))

    # ~48 MiB on v7x (64 MiB VMEM), ~96 MiB on v5e/v6e (128 MiB VMEM).
    vmem_limit = min(int(vmem_cap * 3 // 4), 100 * 1024 * 1024)

    # advisory cost estimate so XLA schedules surrounding ops sensibly
    w_itemsize = 2 if use_bf16_mxu else 4
    flops = 4 * 2 * B * S * E * E + 4 * B * num_heads * S * S * head_dim
    transcendentals = B * num_heads * S * S + B * num_heads * S + B * S
    bytes_accessed = (4 * (3 * B * S * E + B * S + 6 * E)
                      + w_itemsize * 4 * E * E)

    out2 = pl.pallas_call(
        kernel,
        out_shape=jax.ShapeDtypeStruct((B * S, E), jnp.float32),
        grid=grid,
        in_specs=[
            act_spec, act_spec, mask_spec,
            mat_spec, vec_spec,   # wq, bq
            mat_spec, vec_spec,   # wk, bk
            mat_spec, vec_spec,   # wv, bv
            mat_spec, vec_spec,   # wo, bo
            vec_spec, vec_spec,   # gamma, beta
        ],
        out_specs=out_spec,
        compiler_params=pltpu.CompilerParams(
            dimension_semantics=("parallel",),
            vmem_limit_bytes=vmem_limit,
        ),
        cost_estimate=pl.CostEstimate(
            flops=flops, transcendentals=transcendentals,
            bytes_accessed=bytes_accessed),
    )(x2, t2, mask3, wq, bq, wk, bk, wv, bv, wo, bo, gamma, beta)
    return out2.reshape(B, S, E)


# ------------------------- pure-JAX reference (check) ------------------------
def _reference(x, params, *, num_heads, layer_norm_eps, tgt_features=None, tgt_mask=None):
    if tgt_features is None:
        tgt_features = x
    B, S, E = x.shape
    D = E // num_heads
    q = x @ params["wq"].T + params["bq"]
    k = tgt_features @ params["wk"].T + params["bk"]
    v = tgt_features @ params["wv"].T + params["bv"]

    def sep(a):  # (B,S,E) -> (B,H,S,D)
        return a.reshape(B, S, num_heads, D).transpose(0, 2, 1, 3)

    qh, kh, vh = sep(q), sep(k), sep(v)
    attn = jnp.einsum("bhqd,bhkd->bhqk", qh, kh) / math.sqrt(D)
    if tgt_mask is not None:
        attn = attn + (1.0 - tgt_mask.reshape(B, 1, 1, S)) * -100000.0
    attn = jax.nn.softmax(attn, axis=-1)
    ctx = jnp.einsum("bhqk,bhkd->bhqd", attn, vh)
    ctx = ctx.transpose(0, 2, 1, 3).reshape(B, S, E)
    dense = ctx @ params["wo"].T + params["bo"]
    r = dense + x
    mu = r.mean(-1, keepdims=True)
    var = ((r - mu) ** 2).mean(-1, keepdims=True)
    return (r - mu) / jnp.sqrt(var + layer_norm_eps) * params["gamma"] + params["beta"]


# --------------------------------- main ---------------------------------------
if __name__ == "__main__":
    B, S, E, H = 2, 8, 32, 4
    attention_dropout_prob = 0.0   # dropout layers are identity in this eval-mode forward
    hidden_dropout_prob = 0.0
    layer_norm_eps = 1e-5
    use_bf16 = True                # bf16 MXU operands (f32 accumulate); softmax/LN stay f32

    key = jax.random.PRNGKey(0)
    keys = jax.random.split(key, 12)
    bound = 1.0 / math.sqrt(E)  # nn.Linear default init range

    params = {
        "wq": jax.random.uniform(keys[0], (E, E), jnp.float32, -bound, bound),
        "bq": jax.random.uniform(keys[1], (E,), jnp.float32, -bound, bound),
        "wk": jax.random.uniform(keys[2], (E, E), jnp.float32, -bound, bound),
        "bk": jax.random.uniform(keys[3], (E,), jnp.float32, -bound, bound),
        "wv": jax.random.uniform(keys[4], (E, E), jnp.float32, -bound, bound),
        "bv": jax.random.uniform(keys[5], (E,), jnp.float32, -bound, bound),
        "wo": jax.random.uniform(keys[6], (E, E), jnp.float32, -bound, bound),
        "bo": jax.random.uniform(keys[7], (E,), jnp.float32, -bound, bound),
        "gamma": jnp.ones((E,), jnp.float32),
        "beta": jnp.zeros((E,), jnp.float32),
    }

    x = jax.random.normal(keys[8], (B, S, E), jnp.float32)
    # mask out the last two target positions of batch element 1
    tgt_mask = jnp.ones((B, S), jnp.float32).at[1, -2:].set(0.0)

    out = multihead_attention(
        x, params, num_heads=H, layer_norm_eps=layer_norm_eps, tgt_mask=tgt_mask,
        use_bf16_mxu=use_bf16,
    )
    out = jax.block_until_ready(out)

    ref = _reference(
        x, params, num_heads=H, layer_norm_eps=layer_norm_eps, tgt_mask=tgt_mask
    )
    assert out.shape == (B, S, E)
    # tolerance sized for bf16 MXU operands + approx reciprocal vs an f32 reference
    tol = 2e-2 if use_bf16 else 2e-3
    assert jnp.allclose(out, ref, atol=tol, rtol=tol), "mismatch vs pure-JAX reference"

    print("KERNEL_OK")
</pallas_src>

<mosaic_0001>
module attributes {stable_mosaic.version = 11 : i64} {
  func.func @kernel(%arg0: i32, %arg1: memref<8x32xf32, #tpu.memory_space<vmem>>, %arg2: memref<8x32xf32, #tpu.memory_space<vmem>>, %arg3: memref<1x1x8xf32, #tpu.memory_space<vmem>>, %arg4: memref<32x32xbf16, #tpu.memory_space<vmem>>, %arg5: memref<1x32xf32, #tpu.memory_space<vmem>>, %arg6: memref<32x32xbf16, #tpu.memory_space<vmem>>, %arg7: memref<1x32xf32, #tpu.memory_space<vmem>>, %arg8: memref<32x32xbf16, #tpu.memory_space<vmem>>, %arg9: memref<1x32xf32, #tpu.memory_space<vmem>>, %arg10: memref<32x32xbf16, #tpu.memory_space<vmem>>, %arg11: memref<1x32xf32, #tpu.memory_space<vmem>>, %arg12: memref<1x32xf32, #tpu.memory_space<vmem>>, %arg13: memref<1x32xf32, #tpu.memory_space<vmem>>, %arg14: memref<8x32xf32, #tpu.memory_space<vmem>>) attributes {dimension_semantics = [#tpu.dimension_semantics<parallel>], iteration_bounds = array<i64: 2>, scalar_prefetch = 0 : i64, scratch_operands = 0 : i64, tpu.core_type = #tpu.core_type<tc>, window_params = [{transform_indices = @transform_0, window_bounds = array<i64: 8, 32>}, {transform_indices = @transform_1, window_bounds = array<i64: 8, 32>}, {transform_indices = @transform_2, window_bounds = array<i64: 1, 1, 8>}, {pipeline_mode = #tpu.pipeline_mode<synchronous>, transform_indices = @transform_3, window_bounds = array<i64: 32, 32>}, {pipeline_mode = #tpu.pipeline_mode<synchronous>, transform_indices = @transform_4, window_bounds = array<i64: 1, 32>}, {pipeline_mode = #tpu.pipeline_mode<synchronous>, transform_indices = @transform_5, window_bounds = array<i64: 32, 32>}, {pipeline_mode = #tpu.pipeline_mode<synchronous>, transform_indices = @transform_6, window_bounds = array<i64: 1, 32>}, {pipeline_mode = #tpu.pipeline_mode<synchronous>, transform_indices = @transform_7, window_bounds = array<i64: 32, 32>}, {pipeline_mode = #tpu.pipeline_mode<synchronous>, transform_indices = @transform_8, window_bounds = array<i64: 1, 32>}, {pipeline_mode = #tpu.pipeline_mode<synchronous>, transform_indices = @transform_9, window_bounds = array<i64: 32, 32>}, {pipeline_mode = #tpu.pipeline_mode<synchronous>, transform_indices = @transform_10, window_bounds = array<i64: 1, 32>}, {pipeline_mode = #tpu.pipeline_mode<synchronous>, transform_indices = @transform_11, window_bounds = array<i64: 1, 32>}, {pipeline_mode = #tpu.pipeline_mode<synchronous>, transform_indices = @transform_12, window_bounds = array<i64: 1, 32>}, {transform_indices = @transform_13, window_bounds = array<i64: 8, 32>}]} {
    %c0 = arith.constant 0 : index
    %c0_0 = arith.constant 0 : index
    %0 = vector.load %arg1[%c0, %c0_0] : memref<8x32xf32, #tpu.memory_space<vmem>>, vector<8x32xf32>
    %c0_1 = arith.constant 0 : index
    %c0_2 = arith.constant 0 : index
    %1 = vector.load %arg2[%c0_1, %c0_2] : memref<8x32xf32, #tpu.memory_space<vmem>>, vector<8x32xf32>
    %2 = arith.truncf %0 : vector<8x32xf32> to vector<8x32xbf16>
    %3 = arith.truncf %1 : vector<8x32xf32> to vector<8x32xbf16>
    %c0_3 = arith.constant 0 : index
    %c0_4 = arith.constant 0 : index
    %4 = vector.load %arg4[%c0_3, %c0_4] : memref<32x32xbf16, #tpu.memory_space<vmem>>, vector<32x32xbf16>
    %cst = arith.constant dense<0.000000e+00> : vector<8x32xf32>
    %5 = tpu.matmul %2, %4, %cst {dimension_numbers = #tpu.dot_dimension_numbers<[1], [0], [0], [1], [0, 0, 1, 1], [], []>} : vector<8x32xbf16>, vector<32x32xbf16>, vector<8x32xf32> -> vector<8x32xf32>
    %c0_5 = arith.constant 0 : index
    %c0_6 = arith.constant 0 : index
    %6 = vector.load %arg5[%c0_5, %c0_6] : memref<1x32xf32, #tpu.memory_space<vmem>>, vector<1x32xf32>
    %7 = vector.broadcast %6 : vector<1x32xf32> to vector<8x32xf32>
    %8 = arith.addf %5, %7 : vector<8x32xf32>
    %cst_7 = arith.constant 0.353553385 : f32
    %9 = vector.broadcast %cst_7 : f32 to vector<8x32xf32>
    %10 = arith.mulf %8, %9 : vector<8x32xf32>
    %c0_8 = arith.constant 0 : index
    %c0_9 = arith.constant 0 : index
    %11 = vector.load %arg6[%c0_8, %c0_9] : memref<32x32xbf16, #tpu.memory_space<vmem>>, vector<32x32xbf16>
    %cst_10 = arith.constant dense<0.000000e+00> : vector<8x32xf32>
    %12 = tpu.matmul %3, %11, %cst_10 {dimension_numbers = #tpu.dot_dimension_numbers<[1], [0], [0], [1], [0, 0, 1, 1], [], []>} : vector<8x32xbf16>, vector<32x32xbf16>, vector<8x32xf32> -> vector<8x32xf32>
    %c0_11 = arith.constant 0 : index
    %c0_12 = arith.constant 0 : index
    %13 = vector.load %arg7[%c0_11, %c0_12] : memref<1x32xf32, #tpu.memory_space<vmem>>, vector<1x32xf32>
    %14 = vector.broadcast %13 : vector<1x32xf32> to vector<8x32xf32>
    %15 = arith.addf %12, %14 : vector<8x32xf32>
    %c0_13 = arith.constant 0 : index
    %c0_14 = arith.constant 0 : index
    %16 = vector.load %arg8[%c0_13, %c0_14] : memref<32x32xbf16, #tpu.memory_space<vmem>>, vector<32x32xbf16>
    %cst_15 = arith.constant dense<0.000000e+00> : vector<8x32xf32>
    %17 = tpu.matmul %3, %16, %cst_15 {dimension_numbers = #tpu.dot_dimension_numbers<[1], [0], [0], [1], [0, 0, 1, 1], [], []>} : vector<8x32xbf16>, vector<32x32xbf16>, vector<8x32xf32> -> vector<8x32xf32>
    %c0_16 = arith.constant 0 : index
    %c0_17 = arith.constant 0 : index
    %18 = vector.load %arg9[%c0_16, %c0_17] : memref<1x32xf32, #tpu.memory_space<vmem>>, vector<1x32xf32>
    %19 = vector.broadcast %18 : vector<1x32xf32> to vector<8x32xf32>
    %20 = arith.addf %17, %19 : vector<8x32xf32>
    %21 = vector.shape_cast %10 : vector<8x32xf32> to vector<1x8x32xf32>
    %22 = arith.truncf %21 : vector<1x8x32xf32> to vector<1x8x32xbf16>
    %23 = vector.shape_cast %15 : vector<8x32xf32> to vector<1x8x32xf32>
    %24 = arith.truncf %23 : vector<1x8x32xf32> to vector<1x8x32xbf16>
    %25 = vector.shape_cast %20 : vector<8x32xf32> to vector<1x8x32xf32>
    %26 = arith.truncf %25 : vector<1x8x32xf32> to vector<1x8x32xbf16>
    %c0_18 = arith.constant 0 : index
    %c0_19 = arith.constant 0 : index
    %c0_20 = arith.constant 0 : index
    %27 = vector.load %arg3[%c0_18, %c0_19, %c0_20] : memref<1x1x8xf32, #tpu.memory_space<vmem>>, vector<1x1x8xf32>
    %cst_21 = arith.constant 1.000000e+00 : f32
    %28 = vector.broadcast %cst_21 : f32 to vector<1x1x8xf32>
    %29 = arith.subf %28, %27 : vector<1x1x8xf32>
    %cst_22 = arith.constant -1.000000e+05 : f32
    %30 = vector.broadcast %cst_22 : f32 to vector<1x1x8xf32>
    %31 = arith.mulf %29, %30 : vector<1x1x8xf32>
    %c0_23 = arith.constant 0 : index
    %c0_24 = arith.constant 0 : index
    %32 = vector.load %arg10[%c0_23, %c0_24] : memref<32x32xbf16, #tpu.memory_space<vmem>>, vector<32x32xbf16>
    %33 = vector.extract_strided_slice %22 {offsets = [0, 0, 0], sizes = [1, 8, 8], strides = [1, 1, 1]} : vector<1x8x32xbf16> to vector<1x8x8xbf16>
    %34 = vector.extract_strided_slice %24 {offsets = [0, 0, 0], sizes = [1, 8, 8], strides = [1, 1, 1]} : vector<1x8x32xbf16> to vector<1x8x8xbf16>
    %35 = vector.extract_strided_slice %26 {offsets = [0, 0, 0], sizes = [1, 8, 8], strides = [1, 1, 1]} : vector<1x8x32xbf16> to vector<1x8x8xbf16>
    "tpu.trace_start"() <{level = 10 : i32, message = "bqd,bkd->bqk"}> : () -> ()
    %cst_25 = arith.constant dense<0.000000e+00> : vector<1x8x8xf32>
    %36 = tpu.matmul %33, %34, %cst_25 {dimension_numbers = #tpu.dot_dimension_numbers<[2], [2], [1], [1], [0, 0, 0, 1, 1, 1], [0], [0]>} : vector<1x8x8xbf16>, vector<1x8x8xbf16>, vector<1x8x8xf32> -> vector<1x8x8xf32>
    "tpu.trace_stop"() : () -> ()
    %37 = vector.broadcast %31 : vector<1x1x8xf32> to vector<1x8x8xf32>
    %38 = arith.addf %36, %37 : vector<1x8x8xf32>
    %cst_26 = arith.constant dense<0xFF800000> : vector<1x8xf32>
    %39 = vector.multi_reduction <maximumf>, %38, %cst_26 [2] : vector<1x8x8xf32> to vector<1x8xf32>
    %40 = vector.shape_cast %39 : vector<1x8xf32> to vector<1x8x1xf32>
    %41 = vector.broadcast %40 : vector<1x8x1xf32> to vector<1x8x8xf32>
    %42 = arith.subf %38, %41 : vector<1x8x8xf32>
    %43 = math.exp %42 : vector<1x8x8xf32>
    %cst_27 = arith.constant dense<0.000000e+00> : vector<1x8xf32>
    %44 = vector.multi_reduction <add>, %43, %cst_27 [2] : vector<1x8x8xf32> to vector<1x8xf32>
    %45 = vector.shape_cast %44 : vector<1x8xf32> to vector<1x8x1xf32>
    %46 = tpu.reciprocal %45 {approx = true} : vector<1x8x1xf32> -> vector<1x8x1xf32>
    %47 = vector.broadcast %46 : vector<1x8x1xf32> to vector<1x8x8xf32>
    %48 = arith.mulf %43, %47 : vector<1x8x8xf32>
    %49 = arith.truncf %48 : vector<1x8x8xf32> to vector<1x8x8xbf16>
    "tpu.trace_start"() <{level = 10 : i32, message = "bqk,bkd->bqd"}> : () -> ()
    %cst_28 = arith.constant dense<0.000000e+00> : vector<1x8x8xf32>
    %50 = tpu.matmul %49, %35, %cst_28 {dimension_numbers = #tpu.dot_dimension_numbers<[2], [1], [1], [2], [0, 0, 0, 1, 1, 2], [0], [0]>} : vector<1x8x8xbf16>, vector<1x8x8xbf16>, vector<1x8x8xf32> -> vector<1x8x8xf32>
    "tpu.trace_stop"() : () -> ()
    %51 = vector.shape_cast %50 : vector<1x8x8xf32> to vector<8x8xf32>
    %52 = arith.truncf %51 : vector<8x8xf32> to vector<8x8xbf16>
    %53 = vector.extract_strided_slice %32 {offsets = [0, 0], sizes = [8, 32], strides = [1, 1]} : vector<32x32xbf16> to vector<8x32xbf16>
    %cst_29 = arith.constant dense<0.000000e+00> : vector<8x32xf32>
    %54 = tpu.matmul %52, %53, %cst_29 {dimension_numbers = #tpu.dot_dimension_numbers<[1], [0], [0], [1], [0, 0, 1, 1], [], []>} : vector<8x8xbf16>, vector<8x32xbf16>, vector<8x32xf32> -> vector<8x32xf32>
    %55 = vector.extract_strided_slice %22 {offsets = [0, 0, 8], sizes = [1, 8, 8], strides = [1, 1, 1]} : vector<1x8x32xbf16> to vector<1x8x8xbf16>
    %56 = vector.extract_strided_slice %24 {offsets = [0, 0, 8], sizes = [1, 8, 8], strides = [1, 1, 1]} : vector<1x8x32xbf16> to vector<1x8x8xbf16>
    %57 = vector.extract_strided_slice %26 {offsets = [0, 0, 8], sizes = [1, 8, 8], strides = [1, 1, 1]} : vector<1x8x32xbf16> to vector<1x8x8xbf16>
    "tpu.trace_start"() <{level = 10 : i32, message = "bqd,bkd->bqk"}> : () -> ()
    %cst_30 = arith.constant dense<0.000000e+00> : vector<1x8x8xf32>
    %58 = tpu.matmul %55, %56, %cst_30 {dimension_numbers = #tpu.dot_dimension_numbers<[2], [2], [1], [1], [0, 0, 0, 1, 1, 1], [0], [0]>} : vector<1x8x8xbf16>, vector<1x8x8xbf16>, vector<1x8x8xf32> -> vector<1x8x8xf32>
    "tpu.trace_stop"() : () -> ()
    %59 = vector.broadcast %31 : vector<1x1x8xf32> to vector<1x8x8xf32>
    %60 = arith.addf %58, %59 : vector<1x8x8xf32>
    %cst_31 = arith.constant dense<0xFF800000> : vector<1x8xf32>
    %61 = vector.multi_reduction <maximumf>, %60, %cst_31 [2] : vector<1x8x8xf32> to vector<1x8xf32>
    %62 = vector.shape_cast %61 : vector<1x8xf32> to vector<1x8x1xf32>
    %63 = vector.broadcast %62 : vector<1x8x1xf32> to vector<1x8x8xf32>
    %64 = arith.subf %60, %63 : vector<1x8x8xf32>
    %65 = math.exp %64 : vector<1x8x8xf32>
    %cst_32 = arith.constant dense<0.000000e+00> : vector<1x8xf32>
    %66 = vector.multi_reduction <add>, %65, %cst_32 [2] : vector<1x8x8xf32> to vector<1x8xf32>
    %67 = vector.shape_cast %66 : vector<1x8xf32> to vector<1x8x1xf32>
    %68 = tpu.reciprocal %67 {approx = true} : vector<1x8x1xf32> -> vector<1x8x1xf32>
    %69 = vector.broadcast %68 : vector<1x8x1xf32> to vector<1x8x8xf32>
    %70 = arith.mulf %65, %69 : vector<1x8x8xf32>
    %71 = arith.truncf %70 : vector<1x8x8xf32> to vector<1x8x8xbf16>
    "tpu.trace_start"() <{level = 10 : i32, message = "bqk,bkd->bqd"}> : () -> ()
    %cst_33 = arith.constant dense<0.000000e+00> : vector<1x8x8xf32>
    %72 = tpu.matmul %71, %57, %cst_33 {dimension_numbers = #tpu.dot_dimension_numbers<[2], [1], [1], [2], [0, 0, 0, 1, 1, 2], [0], [0]>} : vector<1x8x8xbf16>, vector<1x8x8xbf16>, vector<1x8x8xf32> -> vector<1x8x8xf32>
    "tpu.trace_stop"() : () -> ()
    %73 = vector.shape_cast %72 : vector<1x8x8xf32> to vector<8x8xf32>
    %74 = arith.truncf %73 : vector<8x8xf32> to vector<8x8xbf16>
    %75 = vector.extract_strided_slice %32 {offsets = [8, 0], sizes = [8, 32], strides = [1, 1]} : vector<32x32xbf16> to vector<8x32xbf16>
    %cst_34 = arith.constant dense<0.000000e+00> : vector<8x32xf32>
    %76 = tpu.matmul %74, %75, %cst_34 {dimension_numbers = #tpu.dot_dimension_numbers<[1], [0], [0], [1], [0, 0, 1, 1], [], []>} : vector<8x8xbf16>, vector<8x32xbf16>, vector<8x32xf32> -> vector<8x32xf32>
    %77 = arith.addf %54, %76 : vector<8x32xf32>
    %78 = vector.extract_strided_slice %22 {offsets = [0, 0, 16], sizes = [1, 8, 8], strides = [1, 1, 1]} : vector<1x8x32xbf16> to vector<1x8x8xbf16>
    %79 = vector.extract_strided_slice %24 {offsets = [0, 0, 16], sizes = [1, 8, 8], strides = [1, 1, 1]} : vector<1x8x32xbf16> to vector<1x8x8xbf16>
    %80 = vector.extract_strided_slice %26 {offsets = [0, 0, 16], sizes = [1, 8, 8], strides = [1, 1, 1]} : vector<1x8x32xbf16> to vector<1x8x8xbf16>
    "tpu.trace_start"() <{level = 10 : i32, message = "bqd,bkd->bqk"}> : () -> ()
    %cst_35 = arith.constant dense<0.000000e+00> : vector<1x8x8xf32>
    %81 = tpu.matmul %78, %79, %cst_35 {dimension_numbers = #tpu.dot_dimension_numbers<[2], [2], [1], [1], [0, 0, 0, 1, 1, 1], [0], [0]>} : vector<1x8x8xbf16>, vector<1x8x8xbf16>, vector<1x8x8xf32> -> vector<1x8x8xf32>
    "tpu.trace_stop"() : () -> ()
    %82 = vector.broadcast %31 : vector<1x1x8xf32> to vector<1x8x8xf32>
    %83 = arith.addf %81, %82 : vector<1x8x8xf32>
    %cst_36 = arith.constant dense<0xFF800000> : vector<1x8xf32>
    %84 = vector.multi_reduction <maximumf>, %83, %cst_36 [2] : vector<1x8x8xf32> to vector<1x8xf32>
    %85 = vector.shape_cast %84 : vector<1x8xf32> to vector<1x8x1xf32>
    %86 = vector.broadcast %85 : vector<1x8x1xf32> to vector<1x8x8xf32>
    %87 = arith.subf %83, %86 : vector<1x8x8xf32>
    %88 = math.exp %87 : vector<1x8x8xf32>
    %cst_37 = arith.constant dense<0.000000e+00> : vector<1x8xf32>
    %89 = vector.multi_reduction <add>, %88, %cst_37 [2] : vector<1x8x8xf32> to vector<1x8xf32>
    %90 = vector.shape_cast %89 : vector<1x8xf32> to vector<1x8x1xf32>
    %91 = tpu.reciprocal %90 {approx = true} : vector<1x8x1xf32> -> vector<1x8x1xf32>
    %92 = vector.broadcast %91 : vector<1x8x1xf32> to vector<1x8x8xf32>
    %93 = arith.mulf %88, %92 : vector<1x8x8xf32>
    %94 = arith.truncf %93 : vector<1x8x8xf32> to vector<1x8x8xbf16>
    "tpu.trace_start"() <{level = 10 : i32, message = "bqk,bkd->bqd"}> : () -> ()
    %cst_38 = arith.constant dense<0.000000e+00> : vector<1x8x8xf32>
    %95 = tpu.matmul %94, %80, %cst_38 {dimension_numbers = #tpu.dot_dimension_numbers<[2], [1], [1], [2], [0, 0, 0, 1, 1, 2], [0], [0]>} : vector<1x8x8xbf16>, vector<1x8x8xbf16>, vector<1x8x8xf32> -> vector<1x8x8xf32>
    "tpu.trace_stop"() : () -> ()
    %96 = vector.shape_cast %95 : vector<1x8x8xf32> to vector<8x8xf32>
    %97 = arith.truncf %96 : vector<8x8xf32> to vector<8x8xbf16>
    %98 = vector.extract_strided_slice %32 {offsets = [16, 0], sizes = [8, 32], strides = [1, 1]} : vector<32x32xbf16> to vector<8x32xbf16>
    %cst_39 = arith.constant dense<0.000000e+00> : vector<8x32xf32>
    %99 = tpu.matmul %97, %98, %cst_39 {dimension_numbers = #tpu.dot_dimension_numbers<[1], [0], [0], [1], [0, 0, 1, 1], [], []>} : vector<8x8xbf16>, vector<8x32xbf16>, vector<8x32xf32> -> vector<8x32xf32>
    %100 = arith.addf %77, %99 : vector<8x32xf32>
    %101 = vector.extract_strided_slice %22 {offsets = [0, 0, 24], sizes = [1, 8, 8], strides = [1, 1, 1]} : vector<1x8x32xbf16> to vector<1x8x8xbf16>
    %102 = vector.extract_strided_slice %24 {offsets = [0, 0, 24], sizes = [1, 8, 8], strides = [1, 1, 1]} : vector<1x8x32xbf16> to vector<1x8x8xbf16>
    %103 = vector.extract_strided_slice %26 {offsets = [0, 0, 24], sizes = [1, 8, 8], strides = [1, 1, 1]} : vector<1x8x32xbf16> to vector<1x8x8xbf16>
    "tpu.trace_start"() <{level = 10 : i32, message = "bqd,bkd->bqk"}> : () -> ()
    %cst_40 = arith.constant dense<0.000000e+00> : vector<1x8x8xf32>
    %104 = tpu.matmul %101, %102, %cst_40 {dimension_numbers = #tpu.dot_dimension_numbers<[2], [2], [1], [1], [0, 0, 0, 1, 1, 1], [0], [0]>} : vector<1x8x8xbf16>, vector<1x8x8xbf16>, vector<1x8x8xf32> -> vector<1x8x8xf32>
    "tpu.trace_stop"() : () -> ()
    %105 = vector.broadcast %31 : vector<1x1x8xf32> to vector<1x8x8xf32>
    %106 = arith.addf %104, %105 : vector<1x8x8xf32>
    %cst_41 = arith.constant dense<0xFF800000> : vector<1x8xf32>
    %107 = vector.multi_reduction <maximumf>, %106, %cst_41 [2] : vector<1x8x8xf32> to vector<1x8xf32>
    %108 = vector.shape_cast %107 : vector<1x8xf32> to vector<1x8x1xf32>
    %109 = vector.broadcast %108 : vector<1x8x1xf32> to vector<1x8x8xf32>
    %110 = arith.subf %106, %109 : vector<1x8x8xf32>
    %111 = math.exp %110 : vector<1x8x8xf32>
    %cst_42 = arith.constant dense<0.000000e+00> : vector<1x8xf32>
    %112 = vector.multi_reduction <add>, %111, %cst_42 [2] : vector<1x8x8xf32> to vector<1x8xf32>
    %113 = vector.shape_cast %112 : vector<1x8xf32> to vector<1x8x1xf32>
    %114 = tpu.reciprocal %113 {approx = true} : vector<1x8x1xf32> -> vector<1x8x1xf32>
    %115 = vector.broadcast %114 : vector<1x8x1xf32> to vector<1x8x8xf32>
    %116 = arith.mulf %111, %115 : vector<1x8x8xf32>
    %117 = arith.truncf %116 : vector<1x8x8xf32> to vector<1x8x8xbf16>
    "tpu.trace_start"() <{level = 10 : i32, message = "bqk,bkd->bqd"}> : () -> ()
    %cst_43 = arith.constant dense<0.000000e+00> : vector<1x8x8xf32>
    %118 = tpu.matmul %117, %103, %cst_43 {dimension_numbers = #tpu.dot_dimension_numbers<[2], [1], [1], [2], [0, 0, 0, 1, 1, 2], [0], [0]>} : vector<1x8x8xbf16>, vector<1x8x8xbf16>, vector<1x8x8xf32> -> vector<1x8x8xf32>
    "tpu.trace_stop"() : () -> ()
    %119 = vector.shape_cast %118 : vector<1x8x8xf32> to vector<8x8xf32>
    %120 = arith.truncf %119 : vector<8x8xf32> to vector<8x8xbf16>
    %121 = vector.extract_strided_slice %32 {offsets = [24, 0], sizes = [8, 32], strides = [1, 1]} : vector<32x32xbf16> to vector<8x32xbf16>
    %cst_44 = arith.constant dense<0.000000e+00> : vector<8x32xf32>
    %122 = tpu.matmul %120, %121, %cst_44 {dimension_numbers = #tpu.dot_dimension_numbers<[1], [0], [0], [1], [0, 0, 1, 1], [], []>} : vector<8x8xbf16>, vector<8x32xbf16>, vector<8x32xf32> -> vector<8x32xf32>
    %123 = arith.addf %100, %122 : vector<8x32xf32>
    %c0_45 = arith.constant 0 : index
    %c0_46 = arith.constant 0 : index
    %124 = vector.load %arg11[%c0_45, %c0_46] : memref<1x32xf32, #tpu.memory_space<vmem>>, vector<1x32xf32>
    %125 = vector.broadcast %124 : vector<1x32xf32> to vector<8x32xf32>
    %126 = arith.addf %123, %125 : vector<8x32xf32>
    %127 = arith.addf %126, %0 : vector<8x32xf32>
    %cst_47 = arith.constant dense<0.000000e+00> : vector<8xf32>
    %128 = vector.multi_reduction <add>, %127, %cst_47 [1] : vector<8x32xf32> to vector<8xf32>
    %129 = vector.shape_cast %128 : vector<8xf32> to vector<8x1xf32>
    %cst_48 = arith.constant 3.200000e+01 : f32
    %130 = vector.broadcast %cst_48 : f32 to vector<8x1xf32>
    %131 = arith.divf %129, %130 : vector<8x1xf32>
    %132 = vector.broadcast %131 : vector<8x1xf32> to vector<8x32xf32>
    %133 = arith.subf %127, %132 : vector<8x32xf32>
    %134 = vector.broadcast %131 : vector<8x1xf32> to vector<8x32xf32>
    %135 = arith.subf %127, %134 : vector<8x32xf32>
    %136 = arith.mulf %133, %135 : vector<8x32xf32>
    %cst_49 = arith.constant dense<0.000000e+00> : vector<8xf32>
    %137 = vector.multi_reduction <add>, %136, %cst_49 [1] : vector<8x32xf32> to vector<8xf32>
    %138 = vector.shape_cast %137 : vector<8xf32> to vector<8x1xf32>
    %cst_50 = arith.constant 3.200000e+01 : f32
    %139 = vector.broadcast %cst_50 : f32 to vector<8x1xf32>
    %140 = arith.divf %138, %139 : vector<8x1xf32>
    %141 = vector.broadcast %131 : vector<8x1xf32> to vector<8x32xf32>
    %142 = arith.subf %127, %141 : vector<8x32xf32>
    %cst_51 = arith.constant 9.99999974E-6 : f32
    %143 = vector.broadcast %cst_51 : f32 to vector<8x1xf32>
    %144 = arith.addf %140, %143 : vector<8x1xf32>
    %145 = math.rsqrt %144 : vector<8x1xf32>
    %146 = vector.broadcast %145 : vector<8x1xf32> to vector<8x32xf32>
    %147 = arith.mulf %142, %146 : vector<8x32xf32>
    %c0_52 = arith.constant 0 : index
    %c0_53 = arith.constant 0 : index
    %148 = vector.load %arg12[%c0_52, %c0_53] : memref<1x32xf32, #tpu.memory_space<vmem>>, vector<1x32xf32>
    %149 = vector.broadcast %148 : vector<1x32xf32> to vector<8x32xf32>
    %150 = arith.mulf %147, %149 : vector<8x32xf32>
    %c0_54 = arith.constant 0 : index
    %c0_55 = arith.constant 0 : index
    %151 = vector.load %arg13[%c0_54, %c0_55] : memref<1x32xf32, #tpu.memory_space<vmem>>, vector<1x32xf32>
    %152 = vector.broadcast %151 : vector<1x32xf32> to vector<8x32xf32>
    %153 = arith.addf %150, %152 : vector<8x32xf32>
    %c0_56 = arith.constant 0 : index
    %c0_57 = arith.constant 0 : index
    %154 = vector.load %arg14[%c0_56, %c0_57] : memref<8x32xf32, #tpu.memory_space<vmem>>, vector<8x32xf32>
    tpu.vector_store %arg14[%c0_56, %c0_57], %153 {strides = array<i32>} : memref<8x32xf32, #tpu.memory_space<vmem>>, vector<8x32xf32>,
    return
  }
  func.func @transform_0(%arg0: i32) -> (i32, i32) {
    %c0_i32 = arith.constant 0 : i32
    %c0_i32_0 = arith.constant 0 : i32
    return %arg0, %c0_i32 : i32, i32
  }
  func.func @transform_1(%arg0: i32) -> (i32, i32) {
    %c0_i32 = arith.constant 0 : i32
    %c0_i32_0 = arith.constant 0 : i32
    return %arg0, %c0_i32 : i32, i32
  }
  func.func @transform_2(%arg0: i32) -> (i32, i32, i32) {
    %c0_i32 = arith.constant 0 : i32
    %c0_i32_0 = arith.constant 0 : i32
    %c0_i32_1 = arith.constant 0 : i32
    return %arg0, %c0_i32, %c0_i32_0 : i32, i32, i32
  }
  func.func @transform_3(%arg0: i32) -> (i32, i32) {
    %c0_i32 = arith.constant 0 : i32
    %c0_i32_0 = arith.constant 0 : i32
    %c0_i32_1 = arith.constant 0 : i32
    return %c0_i32, %c0_i32_0 : i32, i32
  }
  func.func @transform_4(%arg0: i32) -> (i32, i32) {
    %c0_i32 = arith.constant 0 : i32
    %c0_i32_0 = arith.constant 0 : i32
    %c0_i32_1 = arith.constant 0 : i32
    return %c0_i32, %c0_i32_0 : i32, i32
  }
  func.func @transform_5(%arg0: i32) -> (i32, i32) {
    %c0_i32 = arith.constant 0 : i32
    %c0_i32_0 = arith.constant 0 : i32
    %c0_i32_1 = arith.constant 0 : i32
    return %c0_i32, %c0_i32_0 : i32, i32
  }
  func.func @transform_6(%arg0: i32) -> (i32, i32) {
    %c0_i32 = arith.constant 0 : i32
    %c0_i32_0 = arith.constant 0 : i32
    %c0_i32_1 = arith.constant 0 : i32
    return %c0_i32, %c0_i32_0 : i32, i32
  }
  func.func @transform_7(%arg0: i32) -> (i32, i32) {
    %c0_i32 = arith.constant 0 : i32
    %c0_i32_0 = arith.constant 0 : i32
    %c0_i32_1 = arith.constant 0 : i32
    return %c0_i32, %c0_i32_0 : i32, i32
  }
  func.func @transform_8(%arg0: i32) -> (i32, i32) {
    %c0_i32 = arith.constant 0 : i32
    %c0_i32_0 = arith.constant 0 : i32
    %c0_i32_1 = arith.constant 0 : i32
    return %c0_i32, %c0_i32_0 : i32, i32
  }
  func.func @transform_9(%arg0: i32) -> (i32, i32) {
    %c0_i32 = arith.constant 0 : i32
    %c0_i32_0 = arith.constant 0 : i32
    %c0_i32_1 = arith.constant 0 : i32
    return %c0_i32, %c0_i32_0 : i32, i32
  }
  func.func @transform_10(%arg0: i32) -> (i32, i32) {
    %c0_i32 = arith.constant 0 : i32
    %c0_i32_0 = arith.constant 0 : i32
    %c0_i32_1 = arith.constant 0 : i32
    return %c0_i32, %c0_i32_0 : i32, i32
  }
  func.func @transform_11(%arg0: i32) -> (i32, i32) {
    %c0_i32 = arith.constant 0 : i32
    %c0_i32_0 = arith.constant 0 : i32
    %c0_i32_1 = arith.constant 0 : i32
    return %c0_i32, %c0_i32_0 : i32, i32
  }
  func.func @transform_12(%arg0: i32) -> (i32, i32) {
    %c0_i32 = arith.constant 0 : i32
    %c0_i32_0 = arith.constant 0 : i32
    %c0_i32_1 = arith.constant 0 : i32
    return %c0_i32, %c0_i32_0 : i32, i32
  }
  func.func @transform_13(%arg0: i32) -> (i32, i32) {
    %c0_i32 = arith.constant 0 : i32
    %c0_i32_0 = arith.constant 0 : i32
    return %arg0, %c0_i32 : i32, i32
  }
}

</mosaic_0001>

<llo_original>
// kernel: tpu_custom_call.1
$region0: #{tpu_custom_call.1}
  #allocation0 [shape = 'u32[]', space=smem, size = 0x4, offset = 0x4, fixed_abs, tag = 'smem constant byte address 0x4 - core index']
  #allocation1 [shape = 'u32[72,128]{1,0:T(1,128)}', space=vmem, size = 0x9000, scoped, tag = 'internal scratch']
  %s0 = inlined_call_operand.hbm [shape: f32[16,32], index: 0, kind: input, shape index: {}]
  %s1 = inlined_call_operand.hbm [shape: f32[16,32], index: 1, kind: input, shape index: {}]
  %s2 = inlined_call_operand.hbm [shape: f32[2,1,8], index: 2, kind: input, shape index: {}]
  %s3 = inlined_call_operand.hbm [shape: bf16[32,32], index: 3, kind: input, shape index: {}]
  %s4 = inlined_call_operand.vmem [shape: f32[1,32], index: 4, kind: input, shape index: {}]
  %s5 = inlined_call_operand.hbm [shape: bf16[32,32], index: 5, kind: input, shape index: {}]
  %s6 = inlined_call_operand.vmem [shape: f32[1,32], index: 6, kind: input, shape index: {}]
  %s7 = inlined_call_operand.hbm [shape: bf16[32,32], index: 7, kind: input, shape index: {}]
  %s8 = inlined_call_operand.vmem [shape: f32[1,32], index: 8, kind: input, shape index: {}]
  %s9 = inlined_call_operand.hbm [shape: bf16[32,32], index: 9, kind: input, shape index: {}]
  %s10 = inlined_call_operand.vmem [shape: f32[1,32], index: 10, kind: input, shape index: {}]
  %s11 = inlined_call_operand.vmem [shape: f32[1,32], index: 11, kind: input, shape index: {}]
  %s12 = inlined_call_operand.vmem [shape: f32[1,32], index: 12, kind: input, shape index: {}]
  %s13 = inlined_call_operand.hbm [shape: f32[16,32], index: 13, kind: output, shape index: {}]
  %s14 = sld [smem:[#allocation0]]
  $region113: #{tpu_custom_call.1} parent=0
    _
  %s16 = ssub.s32 1, %s14
  %s17 = scalar_select 0, %s16, %s14
  $region1: #{tpu_custom_call.1} parent=0
    #allocation2 [shape = 'u8[8192]{0}', space=vmem, size = 0x2000, scoped, tag = 'input window, operand 0']
    #allocation3 [shape = 's32[2]{0}', space=sflag, size = 0x8, scoped, tag = 'scoped memory for tpu_custom_call.1']
    #allocation4 [shape = 's32[2]{0}', space=sflag, size = 0x8, scoped, tag = 'scoped memory for tpu_custom_call.1']
    #allocation5 [shape = 'u8[8192]{0}', space=vmem, size = 0x2000, scoped, tag = 'input window, operand 1']
    #allocation6 [shape = 's32[2]{0}', space=sflag, size = 0x8, scoped, tag = 'scoped memory for tpu_custom_call.1']
    #allocation7 [shape = 'u8[1024]{0}', space=vmem, size = 0x400, scoped, tag = 'input window, operand 2']
    #allocation8 [shape = 'u8[8192]{0}', space=vmem, size = 0x2000, scoped, tag = 'input window, operand 3, single buffered']
    #allocation9 [shape = 's32[1]{0}', space=sflag, size = 0x4, scoped, tag = 'scoped memory for tpu_custom_call.1']
    #allocation10 [shape = 'u8[8192]{0}', space=vmem, size = 0x2000, scoped, tag = 'input window, operand 5, single buffered']
    #allocation11 [shape = 'u8[8192]{0}', space=vmem, size = 0x2000, scoped, tag = 'input window, operand 7, single buffered']
    #allocation12 [shape = 's32[1]{0}', space=sflag, size = 0x4, scoped, tag = 'scoped memory for tpu_custom_call.1']
    #allocation13 [shape = 'u8[8192]{0}', space=vmem, size = 0x2000, scoped, tag = 'input window, operand 9, single buffered']
    #allocation14 [shape = 'u8[8192]{0}', space=vmem, size = 0x2000, scoped, tag = 'output window, operand 0']
    %18 = vsyncpa [#allocation3], 0
    %s19 = scalar_lea.sflag [#allocation3], 1
    %20 = vsyncpa %s19, 0
    %21 = vsyncpa [#allocation6], 0
    %s22 = scalar_lea.sflag [#allocation6], 1
    %23 = vsyncpa %s22, 0
    %24 = vsyncpa [#allocation9], 0
    %25 = vsyncpa [#allocation12], 0
    %26 = vsyncpa [#allocation4], 0
    %s27 = scalar_lea.sflag [#allocation4], 1
    %28 = vsyncpa %s27, 0
    loop: start=0, step=1, limit=4
    $region2: #{tpu_custom_call.1} parent=1 // loop_pre_header
      _
    $region3: #{tpu_custom_call.1} parent=1 // loop_header
      %s30 = sphi 0, %s34
      %p31 = scmp.ge.s32.totalorder %s30, 4
      %s40 = sphi 0, %s42
      %s43 = sphi 0, %s40
      %s44 = sphi 0, %s43
      %s60 = sphi 0, %s44
      %s66 = sphi 0, %s68
      %s69 = sphi 0, %s66
      %s70 = sphi 0, %s69
      %s86 = sphi 0, %s70
      %s92 = sphi 0, %s94
      %s95 = sphi 0, %s92
      %s96 = sphi 0, %s95
      %s112 = sphi 0, %s96
      %s116 = sphi 0, %s116
      %s118 = sphi 0, %s116
      %s119 = sphi 0, %s118
      %s133 = sphi 0, %s119
      %s137 = sphi 0, %s137
      %s139 = sphi 0, %s137
      %s140 = sphi 0, %s139
      %s154 = sphi 0, %s140
      %s158 = sphi 0, %s158
      %s160 = sphi 0, %s158
      %s161 = sphi 0, %s160
      %s175 = sphi 0, %s161
      %s179 = sphi 0, %s179
      %s181 = sphi 0, %s179
      %s182 = sphi 0, %s181
      %s196 = sphi 0, %s182
      %s200 = sphi 0, %s200
      %s202 = sphi 0, %s200
      %s203 = sphi 0, %s202
      %s217 = sphi 0, %s203
      %s221 = sphi 0, %s221
      %s223 = sphi 0, %s221
      %s224 = sphi 0, %s223
      %s238 = sphi 0, %s224
      %s242 = sphi 0, %s242
      %s244 = sphi 0, %s242
      %s245 = sphi 0, %s244
      %s259 = sphi 0, %s245
      %s263 = sphi 0, %s263
      %s265 = sphi 0, %s263
      %s266 = sphi 0, %s265
      %s280 = sphi 0, %s266
      %s284 = sphi 0, %s284
      %s286 = sphi 0, %s284
      %s287 = sphi 0, %s286
      %s301 = sphi 0, %s287
      %s305 = sphi 0, %s305
      %s307 = sphi 0, %s305
      %s308 = sphi 0, %s307
      %s322 = sphi 0, %s308
      %s328 = sphi 0, %s330
      %s331 = sphi 0, %s328
      %s332 = sphi 0, %s331
      %s348 = sphi 0, %s332
    $region4: #{tpu_custom_call.1} parent=1 // loop_header_branch
      %33 = sbr.rel (%p31) target = $region8
    $region5: #{tpu_custom_call.1} parent=1 // loop_body
      %s35 = ssub.s32 %s30, 1
      %s36 = ssub.s32 %s30, 2
      %s37 = sadd.s32 %s30, 1
      %s38 = ssub.s32 %s30, %s37
      %p39 = scmp.eq.s32.totalorder %s38, 0
      %s41 = sadd.s32 %s40, 1
      %s42 = scalar_select %p39, %s40, %s41
      %p45 = pneg %p39
      %p46 = scmp.eq.s32.totalorder %s30, 1
      %p47 = por %p45, %p46
      %p48 = scmp.ne.s32.totalorder %s40, %s43
      %p49 = scmp.eq.s32.totalorder %s30, 0
      %p50 = por %p48, %p49
      %p51 = scmp.ne.s32.totalorder %s40, %s43
      %p52 = scmp.eq.s32.totalorder %s35, 1
      %p53 = por %p51, %p52
      %p54 = scmp.ne.s32.totalorder %s43, %s44
      %p55 = scmp.eq.s32.totalorder %s35, 0
      %p56 = por %p54, %p55
      %p57 = scmp.ne.s32.totalorder %s43, %s44
      %p58 = scmp.eq.s32.totalorder %s36, 1
      %p59 = por %p57, %p58
      %p61 = scmp.ne.s32.totalorder %s44, %s60
      %p62 = scmp.eq.s32.totalorder %s36, 0
      %p63 = por %p61, %p62
      %s64 = ssub.s32 %s30, %s37
      %p65 = scmp.eq.s32.totalorder %s64, 0
      %s67 = sadd.s32 %s66, 1
      %s68 = scalar_select %p65, %s66, %s67
      %p71 = pneg %p65
      %p72 = scmp.eq.s32.totalorder %s30, 1
      %p73 = por %p71, %p72
      %p74 = scmp.ne.s32.totalorder %s66, %s69
      %p75 = scmp.eq.s32.totalorder %s30, 0
      %p76 = por %p74, %p75
      %p77 = scmp.ne.s32.totalorder %s66, %s69
      %p78 = scmp.eq.s32.totalorder %s35, 1
      %p79 = por %p77, %p78
      %p80 = scmp.ne.s32.totalorder %s69, %s70
      %p81 = scmp.eq.s32.totalorder %s35, 0
      %p82 = por %p80, %p81
      %p83 = scmp.ne.s32.totalorder %s69, %s70
      %p84 = scmp.eq.s32.totalorder %s36, 1
      %p85 = por %p83, %p84
      %p87 = scmp.ne.s32.totalorder %s70, %s86
      %p88 = scmp.eq.s32.totalorder %s36, 0
      %p89 = por %p87, %p88
      %s90 = ssub.s32 %s30, %s37
      %p91 = scmp.eq.s32.totalorder %s90, 0
      %s93 = sadd.s32 %s92, 1
      %s94 = scalar_select %p91, %s92, %s93
      %p97 = pneg %p91
      %p98 = scmp.eq.s32.totalorder %s30, 1
      %p99 = por %p97, %p98
      %p100 = scmp.ne.s32.totalorder %s92, %s95
      %p101 = scmp.eq.s32.totalorder %s30, 0
      %p102 = por %p100, %p101
      %p103 = scmp.ne.s32.totalorder %s92, %s95
      %p104 = scmp.eq.s32.totalorder %s35, 1
      %p105 = por %p103, %p104
      %p106 = scmp.ne.s32.totalorder %s95, %s96
      %p107 = scmp.eq.s32.totalorder %s35, 0
      %p108 = por %p106, %p107
      %p109 = scmp.ne.s32.totalorder %s95, %s96
      %p110 = scmp.eq.s32.totalorder %s36, 1
      %p111 = por %p109, %p110
      %p113 = scmp.ne.s32.totalorder %s96, %s112
      %p114 = scmp.eq.s32.totalorder %s36, 0
      %p115 = por %p113, %p114
      %s117 = sadd.s32 %s116, 1
      %p120 = scmp.eq.s32.totalorder %s30, 1
      %p121 = scmp.ne.s32.totalorder %s116, %s118
      %p122 = scmp.eq.s32.totalorder %s30, 0
      %p123 = por %p121, %p122
      %p124 = scmp.ne.s32.totalorder %s116, %s118
      %p125 = scmp.eq.s32.totalorder %s35, 1
      %p126 = por %p124, %p125
      %p127 = scmp.ne.s32.totalorder %s118, %s119
      %p128 = scmp.eq.s32.totalorder %s35, 0
      %p129 = por %p127, %p128
      %p130 = scmp.ne.s32.totalorder %s118, %s119
      %p131 = scmp.eq.s32.totalorder %s36, 1
      %p132 = por %p130, %p131
      %p134 = scmp.ne.s32.totalorder %s119, %s133
      %p135 = scmp.eq.s32.totalorder %s36, 0
      %p136 = por %p134, %p135
      %s138 = sadd.s32 %s137, 1
      %p141 = scmp.eq.s32.totalorder %s30, 1
      %p142 = scmp.ne.s32.totalorder %s137, %s139
      %p143 = scmp.eq.s32.totalorder %s30, 0
      %p144 = por %p142, %p143
      %p145 = scmp.ne.s32.totalorder %s137, %s139
      %p146 = scmp.eq.s32.totalorder %s35, 1
      %p147 = por %p145, %p146
      %p148 = scmp.ne.s32.totalorder %s139, %s140
      %p149 = scmp.eq.s32.totalorder %s35, 0
      %p150 = por %p148, %p149
      %p151 = scmp.ne.s32.totalorder %s139, %s140
      %p152 = scmp.eq.s32.totalorder %s36, 1
      %p153 = por %p151, %p152
      %p155 = scmp.ne.s32.totalorder %s140, %s154
      %p156 = scmp.eq.s32.totalorder %s36, 0
      %p157 = por %p155, %p156
      %s159 = sadd.s32 %s158, 1
      %p162 = scmp.eq.s32.totalorder %s30, 1
      %p163 = scmp.ne.s32.totalorder %s158, %s160
      %p164 = scmp.eq.s32.totalorder %s30, 0
      %p165 = por %p163, %p164
      %p166 = scmp.ne.s32.totalorder %s158, %s160
      %p167 = scmp.eq.s32.totalorder %s35, 1
      %p168 = por %p166, %p167
      %p169 = scmp.ne.s32.totalorder %s160, %s161
      %p170 = scmp.eq.s32.totalorder %s35, 0
      %p171 = por %p169, %p170
      %p172 = scmp.ne.s32.totalorder %s160, %s161
      %p173 = scmp.eq.s32.totalorder %s36, 1
      %p174 = por %p172, %p173
      %p176 = scmp.ne.s32.totalorder %s161, %s175
      %p177 = scmp.eq.s32.totalorder %s36, 0
      %p178 = por %p176, %p177
      %s180 = sadd.s32 %s179, 1
      %p183 = scmp.eq.s32.totalorder %s30, 1
      %p184 = scmp.ne.s32.totalorder %s179, %s181
      %p185 = scmp.eq.s32.totalorder %s30, 0
      %p186 = por %p184, %p185
      %p187 = scmp.ne.s32.totalorder %s179, %s181
      %p188 = scmp.eq.s32.totalorder %s35, 1
      %p189 = por %p187, %p188
      %p190 = scmp.ne.s32.totalorder %s181, %s182
      %p191 = scmp.eq.s32.totalorder %s35, 0
      %p192 = por %p190, %p191
      %p193 = scmp.ne.s32.totalorder %s181, %s182
      %p194 = scmp.eq.s32.totalorder %s36, 1
      %p195 = por %p193, %p194
      %p197 = scmp.ne.s32.totalorder %s182, %s196
      %p198 = scmp.eq.s32.totalorder %s36, 0
      %p199 = por %p197, %p198
      %s201 = sadd.s32 %s200, 1
      %p204 = scmp.eq.s32.totalorder %s30, 1
      %p205 = scmp.ne.s32.totalorder %s200, %s202
      %p206 = scmp.eq.s32.totalorder %s30, 0
      %p207 = por %p205, %p206
      %p208 = scmp.ne.s32.totalorder %s200, %s202
      %p209 = scmp.eq.s32.totalorder %s35, 1
      %p210 = por %p208, %p209
      %p211 = scmp.ne.s32.totalorder %s202, %s203
      %p212 = scmp.eq.s32.totalorder %s35, 0
      %p213 = por %p211, %p212
      %p214 = scmp.ne.s32.totalorder %s202, %s203
      %p215 = scmp.eq.s32.totalorder %s36, 1
      %p216 = por %p214, %p215
      %p218 = scmp.ne.s32.totalorder %s203, %s217
      %p219 = scmp.eq.s32.totalorder %s36, 0
      %p220 = por %p218, %p219
      %s222 = sadd.s32 %s221, 1
      %p225 = scmp.eq.s32.totalorder %s30, 1
      %p226 = scmp.ne.s32.totalorder %s221, %s223
      %p227 = scmp.eq.s32.totalorder %s30, 0
      %p228 = por %p226, %p227
      %p229 = scmp.ne.s32.totalorder %s221, %s223
      %p230 = scmp.eq.s32.totalorder %s35, 1
      %p231 = por %p229, %p230
      %p232 = scmp.ne.s32.totalorder %s223, %s224
      %p233 = scmp.eq.s32.totalorder %s35, 0
      %p234 = por %p232, %p233
      %p235 = scmp.ne.s32.totalorder %s223, %s224
      %p236 = scmp.eq.s32.totalorder %s36, 1
      %p237 = por %p235, %p236
      %p239 = scmp.ne.s32.totalorder %s224, %s238
      %p240 = scmp.eq.s32.totalorder %s36, 0
      %p241 = por %p239, %p240
      %s243 = sadd.s32 %s242, 1
      %p246 = scmp.eq.s32.totalorder %s30, 1
      %p247 = scmp.ne.s32.totalorder %s242, %s244
      %p248 = scmp.eq.s32.totalorder %s30, 0
      %p249 = por %p247, %p248
      %p250 = scmp.ne.s32.totalorder %s242, %s244
      %p251 = scmp.eq.s32.totalorder %s35, 1
      %p252 = por %p250, %p251
      %p253 = scmp.ne.s32.totalorder %s244, %s245
      %p254 = scmp.eq.s32.totalorder %s35, 0
      %p255 = por %p253, %p254
      %p256 = scmp.ne.s32.totalorder %s244, %s245
      %p257 = scmp.eq.s32.totalorder %s36, 1
      %p258 = por %p256, %p257
      %p260 = scmp.ne.s32.totalorder %s245, %s259
      %p261 = scmp.eq.s32.totalorder %s36, 0
      %p262 = por %p260, %p261
      %s264 = sadd.s32 %s263, 1
      %p267 = scmp.eq.s32.totalorder %s30, 1
      %p268 = scmp.ne.s32.totalorder %s263, %s265
      %p269 = scmp.eq.s32.totalorder %s30, 0
      %p270 = por %p268, %p269
      %p271 = scmp.ne.s32.totalorder %s263, %s265
      %p272 = scmp.eq.s32.totalorder %s35, 1
      %p273 = por %p271, %p272
      %p274 = scmp.ne.s32.totalorder %s265, %s266
      %p275 = scmp.eq.s32.totalorder %s35, 0
      %p276 = por %p274, %p275
      %p277 = scmp.ne.s32.totalorder %s265, %s266
      %p278 = scmp.eq.s32.totalorder %s36, 1
      %p279 = por %p277, %p278
      %p281 = scmp.ne.s32.totalorder %s266, %s280
      %p282 = scmp.eq.s32.totalorder %s36, 0
      %p283 = por %p281, %p282
      %s285 = sadd.s32 %s284, 1
      %p288 = scmp.eq.s32.totalorder %s30, 1
      %p289 = scmp.ne.s32.totalorder %s284, %s286
      %p290 = scmp.eq.s32.totalorder %s30, 0
      %p291 = por %p289, %p290
      %p292 = scmp.ne.s32.totalorder %s284, %s286
      %p293 = scmp.eq.s32.totalorder %s35, 1
      %p294 = por %p292, %p293
      %p295 = scmp.ne.s32.totalorder %s286, %s287
      %p296 = scmp.eq.s32.totalorder %s35, 0
      %p297 = por %p295, %p296
      %p298 = scmp.ne.s32.totalorder %s286, %s287
      %p299 = scmp.eq.s32.totalorder %s36, 1
      %p300 = por %p298, %p299
      %p302 = scmp.ne.s32.totalorder %s287, %s301
      %p303 = scmp.eq.s32.totalorder %s36, 0
      %p304 = por %p302, %p303
      %s306 = sadd.s32 %s305, 1
      %p309 = scmp.eq.s32.totalorder %s30, 1
      %p310 = scmp.ne.s32.totalorder %s305, %s307
      %p311 = scmp.eq.s32.totalorder %s30, 0
      %p312 = por %p310, %p311
      %p313 = scmp.ne.s32.totalorder %s305, %s307
      %p314 = scmp.eq.s32.totalorder %s35, 1
      %p315 = por %p313, %p314
      %p316 = scmp.ne.s32.totalorder %s307, %s308
      %p317 = scmp.eq.s32.totalorder %s35, 0
      %p318 = por %p316, %p317
      %p319 = scmp.ne.s32.totalorder %s307, %s308
      %p320 = scmp.eq.s32.totalorder %s36, 1
      %p321 = por %p319, %p320
      %p323 = scmp.ne.s32.totalorder %s308, %s322
      %p324 = scmp.eq.s32.totalorder %s36, 0
      %p325 = por %p323, %p324
      %s326 = ssub.s32 %s30, %s37
      %p327 = scmp.eq.s32.totalorder %s326, 0
      %s329 = sadd.s32 %s328, 1
      %s330 = scalar_select %p327, %s328, %s329
      %p333 = pneg %p327
      %p334 = scmp.eq.s32.totalorder %s30, 1
      %p335 = por %p333, %p334
      %p336 = scmp.ne.s32.totalorder %s328, %s331
      %p337 = scmp.eq.s32.totalorder %s30, 0
      %p338 = por %p336, %p337
      %p339 = scmp.ne.s32.totalorder %s328, %s331
      %p340 = scmp.eq.s32.totalorder %s35, 1
      %p341 = por %p339, %p340
      %p342 = scmp.ne.s32.totalorder %s331, %s332
      %p343 = scmp.eq.s32.totalorder %s35, 0
      %p344 = por %p342, %p343
      %p345 = scmp.ne.s32.totalorder %s331, %s332
      %p346 = scmp.eq.s32.totalorder %s36, 1
      %p347 = por %p345, %p346
      %p349 = scmp.ne.s32.totalorder %s332, %s348
      %p350 = scmp.eq.s32.totalorder %s36, 0
      %p351 = por %p349, %p350
      %p352 = scmp.le.s32.totalorder 1, %s30
      %p353 = scmp.lt.s32.totalorder %s30, 3
      %p354 = pnand %p352, %p353
      %p355 = pneg %p354
      // Predicated region
      $region9: #{tpu_custom_call.1} parent=5 // pred_check
        _
      $region10: #{tpu_custom_call.1} parent=5 // pred_check_branch
        %357 = sbr.rel (%p354) target = $region12
      $region11: #{tpu_custom_call.1} parent=5 // pred_region
        %s358 = ssub.s32 %s30, 1
        // Predicated region
        $region13: #{tpu_custom_call.1} parent=11 // pred_check
          %p359 = pneg %p129
        $region14: #{tpu_custom_call.1} parent=11 // pred_check_branch
          %361 = sbr.rel (%p359) target = $region16
        $region15: #{tpu_custom_call.1} parent=11 // pred_region
          %363 = vsyncadd [#allocation9], 0
          %s364 = sshll.u32 %s3, 4
          %s365 = int_to_ptr.hbm [resolvable:$true] %s364
          %s366 = sshll.u32 [#allocation8], 4
          %s367 = int_to_ptr.vmem [resolvable:$true] %s366
          %372 = dma.hbm_to_vmem [thread:$0]  %s365, 256, %s367, [#allocation9], 64, 64, 4
        $region16: #{tpu_custom_call.1} parent=11 // pred_fallthru
          _
        // Predicated region
        $region17: #{tpu_custom_call.1} parent=11 // pred_check
          %p373 = pneg %p150
        $region18: #{tpu_custom_call.1} parent=11 // pred_check_branch
          %375 = sbr.rel (%p373) target = $region20
        $region19: #{tpu_custom_call.1} parent=11 // pred_region
          _
        $region20: #{tpu_custom_call.1} parent=11 // pred_fallthru
          _
        // Predicated region
        $region21: #{tpu_custom_call.1} parent=11 // pred_check
          %p376 = pneg %p171
        $region22: #{tpu_custom_call.1} parent=11 // pred_check_branch
          %378 = sbr.rel (%p376) target = $region24
        $region23: #{tpu_custom_call.1} parent=11 // pred_region
          %380 = vsyncadd [#allocation9], 0
          %s381 = sshll.u32 %s5, 4
          %s382 = int_to_ptr.hbm [resolvable:$true] %s381
          %s383 = sshll.u32 [#allocation10], 4
          %s384 = int_to_ptr.vmem [resolvable:$true] %s383
          %389 = dma.hbm_to_vmem [thread:$0]  %s382, 256, %s384, [#allocation9], 64, 64, 4
        $region24: #{tpu_custom_call.1} parent=11 // pred_fallthru
          _
        // Predicated region
        $region25: #{tpu_custom_call.1} parent=11 // pred_check
          %p390 = pneg %p192
        $region26: #{tpu_custom_call.1} parent=11 // pred_check_branch
          %392 = sbr.rel (%p390) target = $region28
        $region27: #{tpu_custom_call.1} parent=11 // pred_region
          _
        $region28: #{tpu_custom_call.1} parent=11 // pred_fallthru
          _
        // Predicated region
        $region29: #{tpu_custom_call.1} parent=11 // pred_check
          %p393 = pneg %p213
        $region30: #{tpu_custom_call.1} parent=11 // pred_check_branch
          %395 = sbr.rel (%p393) target = $region32
        $region31: #{tpu_custom_call.1} parent=11 // pred_region
          %397 = vsyncadd [#allocation12], 0
          %s398 = sshll.u32 %s7, 4
          %s399 = int_to_ptr.hbm [resolvable:$true] %s398
          %s400 = sshll.u32 [#allocation11], 4
          %s401 = int_to_ptr.vmem [resolvable:$true] %s400
          %406 = dma.hbm_to_vmem [thread:$0]  %s399, 256, %s401, [#allocation12], 64, 64, 4
        $region32: #{tpu_custom_call.1} parent=11 // pred_fallthru
          _
        // Predicated region
        $region33: #{tpu_custom_call.1} parent=11 // pred_check
          %p407 = pneg %p234
        $region34: #{tpu_custom_call.1} parent=11 // pred_check_branch
          %409 = sbr.rel (%p407) target = $region36
        $region35: #{tpu_custom_call.1} parent=11 // pred_region
          _
        $region36: #{tpu_custom_call.1} parent=11 // pred_fallthru
          _
        // Predicated region
        $region37: #{tpu_custom_call.1} parent=11 // pred_check
          %p410 = pneg %p255
        $region38: #{tpu_custom_call.1} parent=11 // pred_check_branch
          %412 = sbr.rel (%p410) target = $region40
        $region39: #{tpu_custom_call.1} parent=11 // pred_region
          %414 = vsyncadd [#allocation12], 0
          %s415 = sshll.u32 %s9, 4
          %s416 = int_to_ptr.hbm [resolvable:$true] %s415
          %s417 = sshll.u32 [#allocation13], 4
          %s418 = int_to_ptr.vmem [resolvable:$true] %s417
          %423 = dma.hbm_to_vmem [thread:$0]  %s416, 256, %s418, [#allocation12], 64, 64, 4
        $region40: #{tpu_custom_call.1} parent=11 // pred_fallthru
          _
        // Predicated region
        $region41: #{tpu_custom_call.1} parent=11 // pred_check
          %p424 = pneg %p276
        $region42: #{tpu_custom_call.1} parent=11 // pred_check_branch
          %426 = sbr.rel (%p424) target = $region44
        $region43: #{tpu_custom_call.1} parent=11 // pred_region
          _
        $region44: #{tpu_custom_call.1} parent=11 // pred_fallthru
          _
        // Predicated region
        $region45: #{tpu_custom_call.1} parent=11 // pred_check
          %p427 = pneg %p297
        $region46: #{tpu_custom_call.1} parent=11 // pred_check_branch
          %429 = sbr.rel (%p427) target = $region48
        $region47: #{tpu_custom_call.1} parent=11 // pred_region
          _
        $region48: #{tpu_custom_call.1} parent=11 // pred_fallthru
          _
        // Predicated region
        $region49: #{tpu_custom_call.1} parent=11 // pred_check
          %p430 = pneg %p318
        $region50: #{tpu_custom_call.1} parent=11 // pred_check_branch
          %432 = sbr.rel (%p430) target = $region52
        $region51: #{tpu_custom_call.1} parent=11 // pred_region
          _
        $region52: #{tpu_custom_call.1} parent=11 // pred_fallthru
          _
      $region12: #{tpu_custom_call.1} parent=5 // pred_fallthru
        _
      %p433 = scmp.lt.s32.totalorder %s30, 2
      // Predicated region
      $region53: #{tpu_custom_call.1} parent=5 // pred_check
        %p434 = pneg %p433
      $region54: #{tpu_custom_call.1} parent=5 // pred_check_branch
        %436 = sbr.rel (%p434) target = $region56
      $region55: #{tpu_custom_call.1} parent=5 // pred_region
        // Predicated region
        $region57: #{tpu_custom_call.1} parent=55 // pred_check
          %p437 = pneg %p50
        $region58: #{tpu_custom_call.1} parent=55 // pred_check_branch
          %439 = sbr.rel (%p437) target = $region60
        $region59: #{tpu_custom_call.1} parent=55 // pred_region
          %s440 = sand.u32 %s40, 1
          %s441 = scalar_lea.sflag [#allocation3], %s440
          %s442 = sand.u32 %s40, 1
          %s443 = smul.addr %s442, 8
          %s444 = scalar_lea.vmem [#allocation2], %s443
          %446 = vsyncadd %s441, 0
          %s447 = smul.addr %s30, 8
          %s448 = scalar_lea.hbm %s0, %s447
          %s450 = sshll.u32 %s448, 4
          %s451 = int_to_ptr.hbm [resolvable:$true] %s450
          %s452 = sshll.u32 %s444, 4
          %s453 = int_to_ptr.vmem [resolvable:$true] %s452
          %455 = dma.hbm_to_vmem [thread:$0]  %s451, 128, %s453, %s441
        $region60: #{tpu_custom_call.1} parent=55 // pred_fallthru
          _
        // Predicated region
        $region61: #{tpu_custom_call.1} parent=55 // pred_check
          %p456 = pneg %p76
        $region62: #{tpu_custom_call.1} parent=55 // pred_check_branch
          %458 = sbr.rel (%p456) target = $region64
        $region63: #{tpu_custom_call.1} parent=55 // pred_region
          %s459 = sand.u32 %s30, 1
          %s460 = scalar_lea.sflag [#allocation6], %s459
          %s461 = sand.u32 %s66, 1
          %s462 = smul.addr %s461, 8
          %s463 = scalar_lea.vmem [#allocation5], %s462
          %465 = vsyncadd %s460, 0
          %s466 = smul.addr %s30, 8
          %s467 = scalar_lea.hbm %s1, %s466
          %s469 = sshll.u32 %s467, 4
          %s470 = int_to_ptr.hbm [resolvable:$true] %s469
          %s471 = sshll.u32 %s463, 4
          %s472 = int_to_ptr.vmem [resolvable:$true] %s471
          %474 = dma.hbm_to_vmem [thread:$0]  %s470, 128, %s472, %s460
        $region64: #{tpu_custom_call.1} parent=55 // pred_fallthru
          _
        // Predicated region
        $region65: #{tpu_custom_call.1} parent=55 // pred_check
          %p475 = pneg %p102
        $region66: #{tpu_custom_call.1} parent=55 // pred_check_branch
          %477 = sbr.rel (%p475) target = $region68
        $region67: #{tpu_custom_call.1} parent=55 // pred_region
          %s478 = sand.u32 %s30, 1
          %s479 = scalar_lea.sflag [#allocation6], %s478
          %s480 = sand.u32 %s92, 1
          %s481 = scalar_lea.vmem [#allocation7], %s480
          %483 = vsyncadd %s479, 0
          %s484 = scalar_lea.hbm %s2, %s30
          %s486 = sshll.u32 %s484, 4
          %s487 = int_to_ptr.hbm [resolvable:$true] %s486
          %s488 = sshll.u32 %s481, 4
          %s489 = int_to_ptr.vmem [resolvable:$true] %s488
          %491 = dma.hbm_to_vmem [thread:$0]  %s487, 16, %s489, %s479
        $region68: #{tpu_custom_call.1} parent=55 // pred_fallthru
          _
      $region56: #{tpu_custom_call.1} parent=5 // pred_fallthru
        _
      %p492 = scmp.le.s32.totalorder 1, %s30
      %p493 = scmp.lt.s32.totalorder %s30, 3
      %p494 = pnand %p492, %p493
      %p495 = pneg %p494
      // Predicated region
      $region69: #{tpu_custom_call.1} parent=5 // pred_check
        _
      $region70: #{tpu_custom_call.1} parent=5 // pred_check_branch
        %497 = sbr.rel (%p494) target = $region72
      $region71: #{tpu_custom_call.1} parent=5 // pred_region
        %s498 = ssub.s32 %s30, 1
        %s499 = sand.u32 %s43, 1
        %s500 = scalar_lea.sflag [#allocation3], %s499
        %s501 = sand.u32 %s43, 1
        %s502 = smul.addr %s501, 8
        %s503 = scalar_lea.vmem [#allocation2], %s502
        // Predicated region
        $region73: #{tpu_custom_call.1} parent=71 // pred_check
          %p504 = pneg %p56
        $region74: #{tpu_custom_call.1} parent=71 // pred_check_branch
          %506 = sbr.rel (%p504) target = $region76
        $region75: #{tpu_custom_call.1} parent=71 // pred_region
          %508 = dma.done %s500, 128
        $region76: #{tpu_custom_call.1} parent=71 // pred_fallthru
          _
        %s509 = sand.u32 %s35, 1
        %s510 = scalar_lea.sflag [#allocation6], %s509
        %s511 = sand.u32 %s69, 1
        %s512 = smul.addr %s511, 8
        %s513 = scalar_lea.vmem [#allocation5], %s512
        // Predicated region
        $region77: #{tpu_custom_call.1} parent=71 // pred_check
          %p514 = pneg %p82
        $region78: #{tpu_custom_call.1} parent=71 // pred_check_branch
          %516 = sbr.rel (%p514) target = $region80
        $region79: #{tpu_custom_call.1} parent=71 // pred_region
          %518 = dma.done %s510, 128
        $region80: #{tpu_custom_call.1} parent=71 // pred_fallthru
          _
        %s519 = sand.u32 %s35, 1
        %s520 = scalar_lea.sflag [#allocation6], %s519
        %s521 = sand.u32 %s95, 1
        %s522 = scalar_lea.vmem [#allocation7], %s521
        // Predicated region
        $region81: #{tpu_custom_call.1} parent=71 // pred_check
          %p523 = pneg %p108
        $region82: #{tpu_custom_call.1} parent=71 // pred_check_branch
          %525 = sbr.rel (%p523) target = $region84
        $region83: #{tpu_custom_call.1} parent=71 // pred_region
          %527 = dma.done %s520, 16
        $region84: #{tpu_custom_call.1} parent=71 // pred_fallthru
          _
        // Predicated region
        $region85: #{tpu_custom_call.1} parent=71 // pred_check
          %p528 = pneg %p129
        $region86: #{tpu_custom_call.1} parent=71 // pred_check_branch
          %530 = sbr.rel (%p528) target = $region88
        $region87: #{tpu_custom_call.1} parent=71 // pred_region
          %532 = dma.done [#allocation9], 256
        $region88: #{tpu_custom_call.1} parent=71 // pred_fallthru
          _
        // Predicated region
        $region89: #{tpu_custom_call.1} parent=71 // pred_check
          %p533 = pneg %p171
        $region90: #{tpu_custom_call.1} parent=71 // pred_check_branch
          %535 = sbr.rel (%p533) target = $region92
        $region91: #{tpu_custom_call.1} parent=71 // pred_region
          %537 = dma.done [#allocation9], 256
        $region92: #{tpu_custom_call.1} parent=71 // pred_fallthru
          _
        // Predicated region
        $region93: #{tpu_custom_call.1} parent=71 // pred_check
          %p538 = pneg %p213
        $region94: #{tpu_custom_call.1} parent=71 // pred_check_branch
          %540 = sbr.rel (%p538) target = $region96
        $region95: #{tpu_custom_call.1} parent=71 // pred_region
          %542 = dma.done [#allocation12], 256
        $region96: #{tpu_custom_call.1} parent=71 // pred_fallthru
          _
        // Predicated region
        $region97: #{tpu_custom_call.1} parent=71 // pred_check
          %p543 = pneg %p255
        $region98: #{tpu_custom_call.1} parent=71 // pred_check_branch
          %545 = sbr.rel (%p543) target = $region100
        $region99: #{tpu_custom_call.1} parent=71 // pred_region
          %547 = dma.done [#allocation12], 256
        $region100: #{tpu_custom_call.1} parent=71 // pred_fallthru
          _
        %s548 = sand.u32 %s43, 1
        %s549 = scalar_lea.sflag [#allocation3], %s548
        %s550 = sand.u32 %s43, 1
        %s551 = smul.addr %s550, 8
        %s552 = scalar_lea.vmem [#allocation2], %s551
        %p553 = pneg %p56
        %p554 = pneg %p53
        %s555 = sand.u32 %s35, 1
        %s556 = scalar_lea.sflag [#allocation6], %s555
        %s557 = sand.u32 %s69, 1
        %s558 = smul.addr %s557, 8
        %s559 = scalar_lea.vmem [#allocation5], %s558
        %p560 = pneg %p82
        %p561 = pneg %p79
        %s562 = sand.u32 %s35, 1
        %s563 = scalar_lea.sflag [#allocation6], %s562
        %s564 = sand.u32 %s95, 1
        %s565 = scalar_lea.vmem [#allocation7], %s564
        %p566 = pneg %p108
        %p567 = pneg %p105
        %p568 = pneg %p129
        %p569 = pneg %p126
        %p570 = pneg %p150
        %p571 = pneg %p147
        %p572 = pneg %p171
        %p573 = pneg %p168
        %p574 = pneg %p192
        %p575 = pneg %p189
        %p576 = pneg %p213
        %p577 = pneg %p210
        %p578 = pneg %p234
        %p579 = pneg %p231
        %p580 = pneg %p255
        %p581 = pneg %p252
        %p582 = pneg %p276
        %p583 = pneg %p273
        %p584 = pneg %p297
        %p585 = pneg %p294
        %p586 = pneg %p318
        %p587 = pneg %p315
        %p588 = pneg %p344
        %p589 = pneg %p341
        %s590 = sand.u32 %s331, 1
        %s591 = scalar_lea.sflag [#allocation4], %s590
        %s592 = sand.u32 %s331, 1
        %s593 = smul.addr %s592, 8
        %s594 = scalar_lea.vmem [#allocation14], %s593
        %v596 = vld [vmem:[%s503] sm:$0xff]
        %v597 = vld [vmem:[%s513] sm:$0xff]
        %v598 = vpack.c.bf16 %v596, %v596
        %v599 = vpack.c.bf16 %v597, %v597
        %v600 = vld [vmem:[#allocation8] sm:$0xf]
        %v601 = vld [vmem:[#allocation8 + $0x4] sm:$0xf]
        %v602 = vld [vmem:[#allocation8 + $0x8] sm:$0xf]
        %v603 = vld [vmem:[#allocation8 + $0xc] sm:$0xf]
        %v604 = vld [vmem:[%s4] sm:$0x1]
        %v606 = vperm.slane %v604, 0
        %v612 = vunpack.c.l.b16 %v600
        %v613 = vunpack.c.l.b16 %v601
        %v614 = vunpack.c.l.b16 %v602
        %v615 = vunpack.c.l.b16 %v603
        %v616 = vpack.c.b16 %v613, %v612
        %v617 = vpack.c.b16 %v615, %v614
        %vm620 = vcmask 261120
        %v622 = vsel %vm620, %v598, 0
        %624 = vmatpush.bf16.msra.mxu0 0
        %625 = vmatpush.bf16.msra.mxu0 0
        %626 = vmatpush.bf16.msra.mxu0 0
        %627 = vmatpush.bf16.msra.mxu0 0
        %628 = vmatpush.bf16.msra.mxu0 0
        %629 = vmatpush.bf16.msra.mxu0 0
        %630 = vmatpush.bf16.msra.mxu0 %v617
        %631 = vmatpush.bf16.msra.mxu0 %v616
        %632 = vmatmul.bf16.gmra.mxu0 %v622
        %v633 = vpop.f32.mrf.mxu0
        %v634 = vadd.f32 %v606, %v633
        %v635 = vpop.f32.mrf.mxu0
        %636 = vdwg.mxu0
        %v637 = vmul.f32 %v634, 0.35355338
        %v638 = vld [vmem:[#allocation10] sm:$0xf]
        %v639 = vld [vmem:[#allocation10 + $0x4] sm:$0xf]
        %v640 = vld [vmem:[#allocation10 + $0x8] sm:$0xf]
        %v641 = vld [vmem:[#allocation10 + $0xc] sm:$0xf]
        %v642 = vld [vmem:[%s6] sm:$0x1]
        %v644 = vperm.slane %v642, 0
        %v650 = vunpack.c.l.b16 %v638
        %v651 = vunpack.c.l.b16 %v639
        %v652 = vunpack.c.l.b16 %v640
        %v653 = vunpack.c.l.b16 %v641
        %v654 = vpack.c.b16 %v651, %v650
        %v655 = vpack.c.b16 %v653, %v652
        %v659 = vsel %vm620, %v599, 0
        %661 = vmatpush.bf16.msra.mxu0 0
        %662 = vmatpush.bf16.msra.mxu0 0
        %663 = vmatpush.bf16.msra.mxu0 0
        %664 = vmatpush.bf16.msra.mxu0 0
        %665 = vmatpush.bf16.msra.mxu0 0
        %666 = vmatpush.bf16.msra.mxu0 0
        %667 = vmatpush.bf16.msra.mxu0 %v655
        %668 = vmatpush.bf16.msra.mxu0 %v654
        %669 = vmatmul.bf16.gmra.mxu0 %v659
        %v670 = vpop.f32.mrf.mxu0
        %v671 = vadd.f32 %v644, %v670
        %v672 = vpop.f32.mrf.mxu0
        %673 = vdwg.mxu0
        %v674 = vld [vmem:[#allocation11] sm:$0xf]
        %v675 = vld [vmem:[#allocation11 + $0x4] sm:$0xf]
        %v676 = vld [vmem:[#allocation11 + $0x8] sm:$0xf]
        %v677 = vld [vmem:[#allocation11 + $0xc] sm:$0xf]
        %v678 = vld [vmem:[%s8] sm:$0x1]
        %v680 = vperm.slane %v678, 0
        %v686 = vunpack.c.l.b16 %v674
        %v687 = vunpack.c.l.b16 %v675
        %v688 = vunpack.c.l.b16 %v676
        %v689 = vunpack.c.l.b16 %v677
        %v690 = vpack.c.b16 %v687, %v686
        %v691 = vpack.c.b16 %v689, %v688
        %694 = vmatpush.bf16.msra.mxu0 0
        %695 = vmatpush.bf16.msra.mxu0 0
        %696 = vmatpush.bf16.msra.mxu0 0
        %697 = vmatpush.bf16.msra.mxu0 0
        %698 = vmatpush.bf16.msra.mxu0 0
        %699 = vmatpush.bf16.msra.mxu0 0
        %700 = vmatpush.bf16.msra.mxu0 %v691
        %701 = vmatpush.bf16.msra.mxu0 %v690
        %702 = vmatmul.bf16.gmra.mxu0 %v659
        %v703 = vpop.f32.mrf.mxu0
        %v704 = vadd.f32 %v680, %v703
        %v705 = vpop.f32.mrf.mxu0
        %706 = vdwg.mxu0
        %v707 = vpack.c.bf16 %v637, %v637
        %v708 = vpack.c.bf16 %v671, %v671
        %v709 = vpack.c.bf16 %v704, %v704
        %v710 = vld [vmem:[%s522] sm:$0x1]
        %v711 = vsub.f32 1.0, %v710
        %v712 = vmul.f32 %v711, -100000.0
        %v713 = vld [vmem:[#allocation13] sm:$0xf]
        %v714 = vld [vmem:[#allocation13 + $0x4] sm:$0xf]
        %v715 = vld [vmem:[#allocation13 + $0x8] sm:$0xf]
        %v716 = vld [vmem:[#allocation13 + $0xc] sm:$0xf]
        %v718 = vperm.slane %v712, 0
        %vm720 = vcmask 64512
        %v722 = vsel %vm720, %v707, 0
        %v725 = vsel %vm720, %v708, 0
        %727 = vmatpush.bf16.xpose.msra.mxu0 0
        %728 = vmatpush.bf16.xpose.msra.mxu0 0
        %729 = vmatpush.bf16.xpose.msra.mxu0 0
        %730 = vmatpush.bf16.xpose.msra.mxu0 0
        %731 = vmatpush.bf16.xpose.msra.mxu0 0
        %732 = vmatpush.bf16.xpose.msra.mxu0 0
        %733 = vmatpush.bf16.xpose.msra.mxu0 0
        %734 = vmatpush.bf16.xpose.msra.mxu0 %v725
        %735 = vmatmul.bf16.gmra.mxu0 %v722
        %v736 = vpop.f32.mrf.mxu0
        %v737 = vadd.f32 %v718, %v736
        %v738 = vpop.f32.mrf.mxu0
        %739 = vdwg.mxu0
        %v740 = vsel %vm720, %v737, -inf
        %741 = vmax.xlane.f32.xlu0 %v740
        %v742 = vpop.xlane.xlu0 %741
        %v743 = vsub.f32 %v737, %v742
        %v744 = vmul.f32 %v743, 1.442695
        %v745 = vpow.pop %v744
        %v746 = vsel %vm720, %v745, 0.0
        %747 = vadd.xlane.f32.xlu0 %v746
        %v748 = vpop.xlane.xlu0 %747
        %v749 = vrcp.pop %v748
        %v750 = vmul.f32 %v745, %v749
        %v751 = vpack.c.bf16 %v750, %v750
        %v753 = vsel %vm720, %v751, 0
        %vm755 = vcmask 1043456
        %v757 = vsel %vm755, %v709, 0
        %759 = vmatpush.bf16.msra.mxu0 0
        %760 = vmatpush.bf16.msra.mxu0 0
        %761 = vmatpush.bf16.msra.mxu0 0
        %762 = vmatpush.bf16.msra.mxu0 0
        %763 = vmatpush.bf16.msra.mxu0 0
        %764 = vmatpush.bf16.msra.mxu0 0
        %765 = vmatpush.bf16.msra.mxu0 0
        %766 = vmatpush.bf16.msra.mxu0 %v757
        %767 = vmatmul.bf16.gmra.mxu0 %v753
        %v768 = vpop.f32.mrf.mxu0
        %v769 = vadd.f32 0.0, %v768
        %v770 = vpop.f32.mrf.mxu0
        %771 = vdwg.mxu0
        %v772 = vpack.c.bf16 %v769, %v769
        %v774 = vunpack.c.l.b16 %v707
        %v775 = vpack.c.b16 %v774, %v774
        %776 = vrot.lane.b32.xlu0 %v775, 120
        %v777 = vpop.permute.xlu0 %776
        %v779 = vunpack.c.l.b16 %v708
        %v780 = vpack.c.b16 %v779, %v779
        %781 = vrot.lane.b32.xlu0 %v780, 120
        %v782 = vpop.permute.xlu0 %781
        %v784 = vsel %vm720, %v777, 0
        %v787 = vsel %vm720, %v782, 0
        %789 = vmatpush.bf16.xpose.msra.mxu0 0
        %790 = vmatpush.bf16.xpose.msra.mxu0 0
        %791 = vmatpush.bf16.xpose.msra.mxu0 0
        %792 = vmatpush.bf16.xpose.msra.mxu0 0
        %793 = vmatpush.bf16.xpose.msra.mxu0 0
        %794 = vmatpush.bf16.xpose.msra.mxu0 0
        %795 = vmatpush.bf16.xpose.msra.mxu0 0
        %796 = vmatpush.bf16.xpose.msra.mxu0 %v787
        %797 = vmatmul.bf16.gmra.mxu0 %v784
        %v798 = vpop.f32.mrf.mxu0
        %v799 = vadd.f32 %v718, %v798
        %v800 = vpop.f32.mrf.mxu0
        %801 = vdwg.mxu0
        %v802 = vsel %vm720, %v799, -inf
        %803 = vmax.xlane.f32.xlu0 %v802
        %v804 = vpop.xlane.xlu0 %803
        %v805 = vsub.f32 %v799, %v804
        %v806 = vmul.f32 %v805, 1.442695
        %v807 = vpow.pop %v806
        %v808 = vsel %vm720, %v807, 0.0
        %809 = vadd.xlane.f32.xlu0 %v808
        %v810 = vpop.xlane.xlu0 %809
        %v811 = vrcp.pop %v810
        %v812 = vmul.f32 %v807, %v811
        %v813 = vpack.c.bf16 %v812, %v812
        %v815 = vunpack.c.l.b16 %v709
        %v816 = vpack.c.b16 %v815, %v815
        %817 = vrot.lane.b32.xlu0 %v816, 120
        %v818 = vpop.permute.xlu0 %817
        %v820 = vsel %vm720, %v813, 0
        %v823 = vsel %vm755, %v818, 0
        %825 = vmatpush.bf16.msra.mxu0 0
        %826 = vmatpush.bf16.msra.mxu0 0
        %827 = vmatpush.bf16.msra.mxu0 0
        %828 = vmatpush.bf16.msra.mxu0 0
        %829 = vmatpush.bf16.msra.mxu0 0
        %830 = vmatpush.bf16.msra.mxu0 0
        %831 = vmatpush.bf16.msra.mxu0 0
        %832 = vmatpush.bf16.msra.mxu0 %v823
        %833 = vmatmul.bf16.gmra.mxu0 %v820
        %v834 = vpop.f32.mrf.mxu0
        %v835 = vadd.f32 0.0, %v834
        %v836 = vpop.f32.mrf.mxu0
        %837 = vdwg.mxu0
        %v838 = vpack.c.bf16 %v835, %v835
        %v840 = vsel %vm720, %v838, 0
        %v843 = vsel %vm755, %v714, 0
        %845 = vmatpush.bf16.msra.mxu0 0
        %846 = vmatpush.bf16.msra.mxu0 0
        %847 = vmatpush.bf16.msra.mxu0 0
        %848 = vmatpush.bf16.msra.mxu0 0
        %849 = vmatpush.bf16.msra.mxu0 0
        %850 = vmatpush.bf16.msra.mxu0 0
        %851 = vmatpush.bf16.msra.mxu0 0
        %852 = vmatpush.bf16.msra.mxu0 %v843
        %853 = vmatmul.bf16.gmra.mxu0 %v840
        %v854 = vpop.f32.mrf.mxu0
        %v855 = vadd.f32 0.0, %v854
        %v856 = vpop.f32.mrf.mxu0
        %857 = vdwg.mxu0
        %v859 = vsel %vm720, %v772, 0
        %v862 = vsel %vm755, %v713, 0
        %864 = vmatpush.bf16.msra.mxu0 0
        %865 = vmatpush.bf16.msra.mxu0 0
        %866 = vmatpush.bf16.msra.mxu0 0
        %867 = vmatpush.bf16.msra.mxu0 0
        %868 = vmatpush.bf16.msra.mxu0 0
        %869 = vmatpush.bf16.msra.mxu0 0
        %870 = vmatpush.bf16.msra.mxu0 0
        %871 = vmatpush.bf16.msra.mxu0 %v862
        %872 = vmatmul.bf16.gmra.mxu0 %v859
        %v873 = vpop.f32.mrf.mxu0
        %v874 = vadd.f32 %v855, %v873
        %v875 = vpop.f32.mrf.mxu0
        %876 = vdwg.mxu0
        %877 = vrot.lane.b32.xlu0 %v775, 112
        %v878 = vpop.permute.xlu0 %877
        %879 = vrot.lane.b32.xlu0 %v780, 112
        %v880 = vpop.permute.xlu0 %879
        %v882 = vsel %vm720, %v878, 0
        %v885 = vsel %vm720, %v880, 0
        %887 = vmatpush.bf16.xpose.msra.mxu0 0
        %888 = vmatpush.bf16.xpose.msra.mxu0 0
        %889 = vmatpush.bf16.xpose.msra.mxu0 0
        %890 = vmatpush.bf16.xpose.msra.mxu0 0
        %891 = vmatpush.bf16.xpose.msra.mxu0 0
        %892 = vmatpush.bf16.xpose.msra.mxu0 0
        %893 = vmatpush.bf16.xpose.msra.mxu0 0
        %894 = vmatpush.bf16.xpose.msra.mxu0 %v885
        %895 = vmatmul.bf16.gmra.mxu0 %v882
        %v896 = vpop.f32.mrf.mxu0
        %v897 = vadd.f32 %v718, %v896
        %v898 = vpop.f32.mrf.mxu0
        %899 = vdwg.mxu0
        %v900 = vsel %vm720, %v897, -inf
        %901 = vmax.xlane.f32.xlu0 %v900
        %v902 = vpop.xlane.xlu0 %901
        %v903 = vsub.f32 %v897, %v902
        %v904 = vmul.f32 %v903, 1.442695
        %v905 = vpow.pop %v904
        %v906 = vsel %vm720, %v905, 0.0
        %907 = vadd.xlane.f32.xlu0 %v906
        %v908 = vpop.xlane.xlu0 %907
        %v909 = vrcp.pop %v908
        %v910 = vmul.f32 %v905, %v909
        %v911 = vpack.c.bf16 %v910, %v910
        %912 = vrot.lane.b32.xlu0 %v816, 112
        %v913 = vpop.permute.xlu0 %912
        %v915 = vsel %vm720, %v911, 0
        %v918 = vsel %vm755, %v913, 0
        %920 = vmatpush.bf16.msra.mxu0 0
        %921 = vmatpush.bf16.msra.mxu0 0
        %922 = vmatpush.bf16.msra.mxu0 0
        %923 = vmatpush.bf16.msra.mxu0 0
        %924 = vmatpush.bf16.msra.mxu0 0
        %925 = vmatpush.bf16.msra.mxu0 0
        %926 = vmatpush.bf16.msra.mxu0 0
        %927 = vmatpush.bf16.msra.mxu0 %v918
        %928 = vmatmul.bf16.gmra.mxu0 %v915
        %v929 = vpop.f32.mrf.mxu0
        %v930 = vadd.f32 0.0, %v929
        %v931 = vpop.f32.mrf.mxu0
        %932 = vdwg.mxu0
        %v933 = vpack.c.bf16 %v930, %v930
        %v935 = vsel %vm720, %v933, 0
        %v938 = vsel %vm755, %v715, 0
        %940 = vmatpush.bf16.msra.mxu0 0
        %941 = vmatpush.bf16.msra.mxu0 0
        %942 = vmatpush.bf16.msra.mxu0 0
        %943 = vmatpush.bf16.msra.mxu0 0
        %944 = vmatpush.bf16.msra.mxu0 0
        %945 = vmatpush.bf16.msra.mxu0 0
        %946 = vmatpush.bf16.msra.mxu0 0
        %947 = vmatpush.bf16.msra.mxu0 %v938
        %948 = vmatmul.bf16.gmra.mxu0 %v935
        %v949 = vpop.f32.mrf.mxu0
        %v950 = vadd.f32 0.0, %v949
        %v951 = vpop.f32.mrf.mxu0
        %952 = vdwg.mxu0
        %v953 = vadd.f32 %v874, %v950
        %954 = vrot.lane.b32.xlu0 %v775, 104
        %v955 = vpop.permute.xlu0 %954
        %956 = vrot.lane.b32.xlu0 %v780, 104
        %v957 = vpop.permute.xlu0 %956
        %v959 = vsel %vm720, %v955, 0
        %v962 = vsel %vm720, %v957, 0
        %964 = vmatpush.bf16.xpose.msra.mxu0 0
        %965 = vmatpush.bf16.xpose.msra.mxu0 0
        %966 = vmatpush.bf16.xpose.msra.mxu0 0
        %967 = vmatpush.bf16.xpose.msra.mxu0 0
        %968 = vmatpush.bf16.xpose.msra.mxu0 0
        %969 = vmatpush.bf16.xpose.msra.mxu0 0
        %970 = vmatpush.bf16.xpose.msra.mxu0 0
        %971 = vmatpush.bf16.xpose.msra.mxu0 %v962
        %972 = vmatmul.bf16.gmra.mxu0 %v959
        %v973 = vpop.f32.mrf.mxu0
        %v974 = vadd.f32 %v718, %v973
        %v975 = vpop.f32.mrf.mxu0
        %976 = vdwg.mxu0
        %v977 = vsel %vm720, %v974, -inf
        %978 = vmax.xlane.f32.xlu0 %v977
        %v979 = vpop.xlane.xlu0 %978
        %v980 = vsub.f32 %v974, %v979
        %v981 = vmul.f32 %v980, 1.442695
        %v982 = vpow.pop %v981
        %v983 = vsel %vm720, %v982, 0.0
        %984 = vadd.xlane.f32.xlu0 %v983
        %v985 = vpop.xlane.xlu0 %984
        %v986 = vrcp.pop %v985
        %v987 = vmul.f32 %v982, %v986
        %v988 = vpack.c.bf16 %v987, %v987
        %989 = vrot.lane.b32.xlu0 %v816, 104
        %v990 = vpop.permute.xlu0 %989
        %v992 = vsel %vm720, %v988, 0
        %v995 = vsel %vm755, %v990, 0
        %997 = vmatpush.bf16.msra.mxu0 0
        %998 = vmatpush.bf16.msra.mxu0 0
        %999 = vmatpush.bf16.msra.mxu0 0
        %1000 = vmatpush.bf16.msra.mxu0 0
        %1001 = vmatpush.bf16.msra.mxu0 0
        %1002 = vmatpush.bf16.msra.mxu0 0
        %1003 = vmatpush.bf16.msra.mxu0 0
        %1004 = vmatpush.bf16.msra.mxu0 %v995
        %1005 = vmatmul.bf16.gmra.mxu0 %v992
        %v1006 = vpop.f32.mrf.mxu0
        %v1007 = vadd.f32 0.0, %v1006
        %v1008 = vpop.f32.mrf.mxu0
        %1009 = vdwg.mxu0
        %v1010 = vpack.c.bf16 %v1007, %v1007
        %v1012 = vsel %vm720, %v1010, 0
        %v1015 = vsel %vm755, %v716, 0
        %1017 = vmatpush.bf16.msra.mxu0 0
        %1018 = vmatpush.bf16.msra.mxu0 0
        %1019 = vmatpush.bf16.msra.mxu0 0
        %1020 = vmatpush.bf16.msra.mxu0 0
        %1021 = vmatpush.bf16.msra.mxu0 0
        %1022 = vmatpush.bf16.msra.mxu0 0
        %1023 = vmatpush.bf16.msra.mxu0 0
        %1024 = vmatpush.bf16.msra.mxu0 %v1015
        %1025 = vmatmul.bf16.gmra.mxu0 %v1012
        %v1026 = vpop.f32.mrf.mxu0
        %v1027 = vadd.f32 0.0, %v1026
        %v1028 = vpop.f32.mrf.mxu0
        %1029 = vdwg.mxu0
        %v1030 = vadd.f32 %v953, %v1027
        %v1031 = vld [vmem:[%s10] sm:$0x1]
        %v1033 = vperm.slane %v1031, 0
        %v1035 = vadd.f32 %v1030, %v1033
        %v1036 = vadd.f32 %v1035, %v596
        %v1037 = vsel %vm620, %v1036, 0.0
        %1038 = vadd.xlane.f32.xlu0 %v1037
        %v1039 = vpop.xlane.xlu0 %1038
        %v1040 = vrcp.pop 32.0
        %v1041 = vmul.f32 32.0, %v1040
        %v1042 = vsub.f32 1.0, %v1041
        %v1043 = vmul.f32 %v1040, %v1042
        %v1044 = vadd.f32 %v1040, %v1043
        %vm1045 = vweird.f32 %v1040
        %v1046 = vsel %vm1045, %v1040, %v1044
        %v1047 = vmul.f32 %v1039, %v1046
        %v1048 = vsub.f32 %v1036, %v1047
        %v1049 = vmul.f32 %v1048, %v1048
        %v1050 = vsel %vm620, %v1049, 0.0
        %1051 = vadd.xlane.f32.xlu0 %v1050
        %v1052 = vpop.xlane.xlu0 %1051
        %v1053 = vmul.f32 %v1052, %v1046
        %v1054 = vadd.f32 %v1053, 1e-05
        %v1055 = vrsqrt.pop %v1054
        %v1056 = vmul.f32 %v1055, %v1054
        %v1057 = vmul.f32 %v1056, %v1055
        %v1058 = vmul.f32 0.5, %v1057
        %v1059 = vsub.f32 1.5, %v1058
        %v1060 = vmul.f32 %v1055, %v1059
        %vm1061 = vweird.f32 %v1054
        %vm1062 = vweird.f32 %v1055
        %vm1063 = vmor %vm1061, %vm1062
        %v1064 = vsel %vm1063, %v1055, %v1060
        %v1065 = vmul.f32 %v1048, %v1064
        %v1066 = vld [vmem:[%s11] sm:$0x1]
        %v1068 = vperm.slane %v1066, 0
        %v1070 = vmul.f32 %v1065, %v1068
        %v1071 = vld [vmem:[%s12] sm:$0x1]
        %v1073 = vperm.slane %v1071, 0
        %v1075 = vadd.f32 %v1070, %v1073
        %1076 = vst.msk [vmem:[%s594] sm:$0xff] %vm620, %v1075
        %s1077 = sand.u32 %s331, 1
        %s1078 = scalar_lea.sflag [#allocation4], %s1077
        %s1079 = sand.u32 %s331, 1
        %s1080 = smul.addr %s1079, 8
        %s1081 = scalar_lea.vmem [#allocation14], %s1080
        // Predicated region
        $region101: #{tpu_custom_call.1} parent=71 // pred_check
          %p1082 = pneg %p341
        $region102: #{tpu_custom_call.1} parent=71 // pred_check_branch
          %1084 = sbr.rel (%p1082) target = $region104
        $region103: #{tpu_custom_call.1} parent=71 // pred_region
          %1086 = vsyncadd %s1078, 0
          %s1087 = smul.addr %s35, 8
          %s1088 = scalar_lea.hbm %s13, %s1087
          %s1090 = sshll.u32 %s1081, 4
          %s1091 = int_to_ptr.vmem [resolvable:$true] %s1090
          %s1092 = sshll.u32 %s1088, 4
          %s1093 = int_to_ptr.hbm [resolvable:$true] %s1092
          %1095 = dma.vmem_to_hbm [thread:$0]  %s1091, 128, %s1093, %s1078
        $region104: #{tpu_custom_call.1} parent=71 // pred_fallthru
          _
      $region72: #{tpu_custom_call.1} parent=5 // pred_fallthru
        _
      %p1096 = scmp.le.s32.totalorder 2, %s30
      // Predicated region
      $region105: #{tpu_custom_call.1} parent=5 // pred_check
        %p1097 = pneg %p1096
      $region106: #{tpu_custom_call.1} parent=5 // pred_check_branch
        %1099 = sbr.rel (%p1097) target = $region108
      $region107: #{tpu_custom_call.1} parent=5 // pred_region
        %s1100 = ssub.s32 %s30, 2
        // Predicated region
        $region109: #{tpu_custom_call.1} parent=107 // pred_check
          %p1101 = pneg %p347
        $region110: #{tpu_custom_call.1} parent=107 // pred_check_branch
          %1103 = sbr.rel (%p1101) target = $region112
        $region111: #{tpu_custom_call.1} parent=107 // pred_region
          %s1104 = sand.u32 %s332, 1
          %s1105 = scalar_lea.sflag [#allocation4], %s1104
          %s1106 = sand.u32 %s332, 1
          %s1107 = smul.addr %s1106, 8
          %s1108 = scalar_lea.vmem [#allocation14], %s1107
          %1110 = dma.done %s1105, 128
        $region112: #{tpu_custom_call.1} parent=107 // pred_fallthru
          _
      $region108: #{tpu_custom_call.1} parent=5 // pred_fallthru
        _
    $region6: #{tpu_custom_call.1} parent=1 // loop_footer
      %s34 = sadd.s32 1, %s30
    $region7: #{tpu_custom_call.1} parent=1 // loop_footer_branch
      %29 = sbr.rel target = $region3
    $region8: #{tpu_custom_call.1} parent=1 // loop_exit
      _
    %1111 = vsyncpa [#allocation3], 1
    %s1112 = scalar_lea.sflag [#allocation3], 1
    %1113 = vsyncpa %s1112, 1
    %1114 = vsyncpa [#allocation6], 1
    %s1115 = scalar_lea.sflag [#allocation6], 1
    %1116 = vsyncpa %s1115, 1
    %1117 = vsyncpa [#allocation9], 1
    %1118 = vsyncpa [#allocation12], 1
    %1119 = vsyncpa [#allocation4], 1
    %s1120 = scalar_lea.sflag [#allocation4], 1
    %1121 = vsyncpa %s1120, 1

</llo_original>
